<compile_context>
chip_gen: v7x
topology: tpu7x:2x2x1
jax: 0.10.0
libtpu: 0.0.40
codegen_flags: <defaults>
</compile_context>

<pallas_src>
import jax
import jax.numpy as jnp
import numpy as np
from jax.experimental import pallas as pl
from jax.experimental.pallas import tpu as pltpu


# --------------------------------------------------------------------------------------
# Kernel
# --------------------------------------------------------------------------------------
def make_gcn_pooled_kernel(tb, f, h, hfc, c, compute_dtype):
    tbf, tbh = tb * f, tb * h
    f32 = jnp.float32

    def kernel(x_ref, a_ref, wconv_ref, whead_ref, bias_ref, pmask_ref, o_ref):
        x = x_ref[0]                              # (N, tb*f)  node-major, batch folded into lanes
        a = a_ref[...]                            # (N, N)     D^-1/2 (A + I) D^-1/2
        n = x.shape[0]

        w1b = wconv_ref[:tbf, :]                  # kron(I_tb, W1)  (tb*f, tb*h)
        w2b = wconv_ref[tbf:, :]                  # kron(I_tb, W2)  (tb*h, tb*h)
        wfold1 = whead_ref[:2 * tbh, :]           # block-tiled de-interleaved lin1 weight (2*tbh, hfc)
        l2w = whead_ref[2 * tbh:, :c]             # lin2 weight (hfc, c)  (keep the [:c] slice!)
        b1 = bias_ref[0:1, :tbh]                  # conv1 bias tiled tb times (row-packed, f32)
        b2 = bias_ref[1:2, :tbh]                  # conv2 bias tiled tb times
        l1b = bias_ref[2:3, :hfc]                 # lin1 bias
        l2b = bias_ref[3:4, :c]                   # lin2 bias
        pmask = pmask_ref[...]                    # (tb, 2*tbh) 0/1 lane->row block mask, f32

        # --- GCNConv 1: relu( A_hat @ (X W1) + b1 ); batch lives in the lane dim -----------------
        xw1 = jnp.dot(x, w1b, preferred_element_type=f32)                              # (N, tb*h)
        s1 = jnp.dot(a, xw1.astype(compute_dtype), preferred_element_type=f32)
        h1 = jnp.maximum(s1 + b1, 0.0).astype(compute_dtype)       # elementwise in f32, store bf16
        # --- GCNConv 2 ---------------------------------------------------------------------------
        xw2 = jnp.dot(h1, w2b, preferred_element_type=f32)
        s2 = jnp.dot(a, xw2.astype(compute_dtype), preferred_element_type=f32)
        h2 = jnp.maximum(s2 + b2, 0.0).astype(compute_dtype)

        # --- global_mean_pool as an MXU matmul (sum with a ones row, scale in f32) ----------------
        ones_row = jnp.ones((1, n), compute_dtype)
        inv_n = 1.0 / n
        m1 = jnp.dot(ones_row, h1, preferred_element_type=f32) * inv_n                 # (1, tb*h)
        m2 = jnp.dot(ones_row, h2, preferred_element_type=f32) * inv_n
        mrow = jnp.concatenate([m1, m2], axis=1)                                       # (1, 2*tbh)

        # --- lin1: the lanes->rows unfold is fused into the weight (mask + block-tiled rows), so
        #     z[t] = [mean1_t | mean2_t] @ deinterleaved_lin1 without any in-kernel relayout -------
        bb = (jnp.broadcast_to(mrow, (tb, 2 * tbh)) * pmask).astype(compute_dtype)     # (tb, 2*tbh)
        z = jnp.maximum(jnp.dot(bb, wfold1, preferred_element_type=f32) + l1b, 0.0)    # (tb, hfc)
        # dropout(p=0.5) is identity at inference.
        # TODO(synk): training-mode dropout not implemented.

        # --- lin2 + log_softmax ---------------------------------------------------------------
        logits = jnp.dot(z.astype(compute_dtype), l2w, preferred_element_type=f32) + l2b  # (tb, c)
        mx = jnp.max(logits, axis=-1, keepdims=True)
        lse = jnp.log(jnp.sum(jnp.exp(logits - mx), axis=-1, keepdims=True)) + mx
        o_ref[0] = (logits - lse).astype(o_ref.dtype)                                  # (tb, c)

    return kernel


# --------------------------------------------------------------------------------------
# Host-side packing (layout plumbing, done once)
# --------------------------------------------------------------------------------------
def pack_gcn_pooled_params(prm, a_hat, tb, compute_dtype):
    f, h = prm["w1"].shape
    hfc = prm["l1w"].shape[1]
    c = prm["l2w"].shape[1]
    assert hfc >= c
    tbf, tbh = tb * f, tb * h

    eye = jnp.eye(tb, dtype=jnp.float32)
    w1b = jnp.kron(eye, prm["w1"])                                     # (tb*f, tb*h) block-diagonal
    w2b = jnp.kron(eye, prm["w2"])                                     # (tb*h, tb*h)
    wconv = jnp.concatenate([w1b, w2b], axis=0).astype(compute_dtype)  # (tb*f + tb*h, tb*h)

    # de-interleave lin1 rows: torch.stack(xs,-1).view interleaves layer-1 / layer-2 features.
    l1_layer1 = prm["l1w"][0::2]                                       # (h, hfc)
    l1_layer2 = prm["l1w"][1::2]                                       # (h, hfc)
    # fuse the lanes->rows unfold into lin1: lane k of block t uses row (k mod h) of each half.
    wfold1 = jnp.concatenate([jnp.tile(l1_layer1, (tb, 1)),
                              jnp.tile(l1_layer2, (tb, 1))], axis=0)   # (2*tbh, hfc)
    l2p = jnp.pad(prm["l2w"], ((0, 0), (0, hfc - c)))                  # pad cols to hfc
    whead = jnp.concatenate([wfold1, l2p], axis=0).astype(compute_dtype)  # (2*tbh + hfc, hfc)

    # lane->row block mask: pool_mask[t, k] = 1 iff lane k belongs to graph t's feature block.
    k_idx = np.arange(2 * tbh)
    blk = np.where(k_idx < tbh, k_idx // h, (k_idx - tbh) // h)
    pool_mask = jnp.asarray((np.arange(tb)[:, None] == blk[None, :]).astype(np.float32))  # (tb, 2*tbh)

    # biases: one segment per row (lane-aligned starts), f32.
    padw = max(tbh, hfc, c)

    def _row(v):
        v = v.reshape(1, -1)
        return jnp.pad(v, ((0, 0), (0, padw - v.shape[1])))

    biases = jnp.concatenate([_row(jnp.tile(prm["b1"], tb)),
                              _row(jnp.tile(prm["b2"], tb)),
                              _row(prm["l1b"]),
                              _row(prm["l2b"])], axis=0).astype(jnp.float32)           # (4, padw)

    # NOTE: if precision matters more than DMA/VMEM, keep A_hat in f32 and use bf16 only for
    # x / weights.  bf16 A_hat is validated below at 5e-2 tolerance.
    return {"a": a_hat.astype(compute_dtype), "wconv": wconv, "whead": whead,
            "biases": biases, "pool_mask": pool_mask,
            "dims": (f, h, hfc, c), "tb": tb, "compute_dtype": compute_dtype}


def _vmem_limit_bytes(n, tb, f, h, hfc, c, cdt):
    """Resident A_hat + weights + activations, with headroom (review item 5)."""
    es = jnp.dtype(cdt).itemsize
    tbf, tbh = tb * f, tb * h
    resident = (n * n * es                        # A_hat (single-buffered)
                + 2 * n * tbf * es                # x tile (double-buffered)
                + (tbf + tbh) * tbh * es          # packed conv weights
                + (2 * tbh + hfc) * hfc * es      # packed head weights
                + 4 * max(tbh, hfc, c) * 4        # biases (f32)
                + tb * 2 * tbh * 4                # pool mask (f32)
                + 6 * n * tbh * 4                 # xw1/xw2/s1/s2/h1/h2 working set (f32 upper bound)
                + 2 * tb * max(c, 128) * 4)       # output tile
    est = int(resident * 1.5)
    return max(32 * 1024 * 1024, min(est, 64 * 1024 * 1024))


# --------------------------------------------------------------------------------------
# Forward wrapper
# --------------------------------------------------------------------------------------
def gcn_model_pooled_forward(x, packed):
    bs, n_nodes, f = x.shape
    tb = packed["tb"]
    f_, h, hfc, c = packed["dims"]
    assert f == f_ and bs % tb == 0
    g = bs // tb
    cdt = packed["compute_dtype"]

    # node-major layout with the batch folded into the lane dim: (g, N, tb*f)
    x_nm = jnp.transpose(x, (1, 0, 2)).reshape(n_nodes, g, tb * f)
    x_nm = jnp.transpose(x_nm, (1, 0, 2)).astype(cdt)

    a, wconv, whead = packed["a"], packed["wconv"], packed["whead"]
    biases, pmask = packed["biases"], packed["pool_mask"]

    kernel = make_gcn_pooled_kernel(tb, f, h, hfc, c, cdt)
    vmem_bytes = _vmem_limit_bytes(n_nodes, tb, f, h, hfc, c, cdt)

    def call(single_buffer_consts):
        def cspec(arr):
            idx = lambda b, _nd=arr.ndim: (0,) * _nd
            if single_buffer_consts:
                # constant-index blocks never change -> single buffer halves their VMEM footprint
                return pl.BlockSpec(arr.shape, idx, pipeline_mode=pl.Buffered(1))
            return pl.BlockSpec(arr.shape, idx)

        return pl.pallas_call(
            kernel,
            out_shape=jax.ShapeDtypeStruct((g, tb, c), jnp.float32),
            grid=(g,),
            in_specs=[
                pl.BlockSpec((1, n_nodes, tb * f), lambda b: (b, 0, 0)),   # tb graphs per step
                cspec(a), cspec(wconv), cspec(whead), cspec(biases), cspec(pmask),
            ],
            out_specs=pl.BlockSpec((1, tb, c), lambda b: (b, 0, 0)),
            compiler_params=pltpu.CompilerParams(
                dimension_semantics=("parallel",),
                vmem_limit_bytes=vmem_bytes),
        )(x_nm, a, wconv, whead, biases, pmask)

    try:
        out = jax.block_until_ready(call(True))
    except Exception:
        # pipeline_mode / pl.Buffered not supported on this JAX version: fall back to the
        # default double-buffered constant blocks (identical numerics, just more VMEM).
        out = jax.block_until_ready(call(False))

    return out.reshape(bs, c)


# --------------------------------------------------------------------------------------
# Pure-JAX f32 reference mirroring the PyTorch forward (eval, mode='cat', mean pooling)
# --------------------------------------------------------------------------------------
def reference_forward(x, batch, a_hat, prm):
    bs, n_nodes, _ = x.shape
    h1 = jax.nn.relu(jnp.einsum("nm,bmf->bnf", a_hat, x @ prm["w1"]) + prm["b1"])
    h2 = jax.nn.relu(jnp.einsum("nm,bmf->bnf", a_hat, h1 @ prm["w2"]) + prm["b2"])
    xcat = jnp.stack([h1, h2], axis=-1).reshape(bs, n_nodes, -1)    # torch.stack(xs,-1).view interleave
    xflat = xcat.reshape(bs * n_nodes, -1)
    counts = jax.ops.segment_sum(jnp.ones((bs * n_nodes,), x.dtype), batch, num_segments=bs)
    pooled = jax.ops.segment_sum(xflat, batch, num_segments=bs) / counts[:, None]   # global_mean_pool
    z = jax.nn.relu(pooled @ prm["l1w"] + prm["l1b"])
    logits = z @ prm["l2w"] + prm["l2b"]                            # dropout identity at eval
    return jax.nn.log_softmax(logits, axis=-1)


# --------------------------------------------------------------------------------------
if __name__ == "__main__":
    # Sizes per the perf review: TB=16 so the folded lane widths TB*F = TB*H = 128 hit the MXU
    # lane width, and grid g = BS // TB = 4 so both v7x TensorCores get >= 2 pipelined steps.
    # Individual shapes stay small (16-node graphs, 8 features, 3 classes).
    BS, N, F = 64, 16, 8         # batch (graphs), num_nodes, n_features
    H, HFC = 8, 32               # hidden_gcn, hidden_fc
    C = 3                        # n_classes
    NUM_LAYERS = 2
    TB = 16                      # graphs per grid step (TB*H = 128; cap near MXU width)

    # deterministic graph (edge_index) -> dense GCN-normalized adjacency D^-1/2 (A + I) D^-1/2
    ar = np.arange(N)
    src = np.concatenate([ar, (ar + 1) % N, (ar + 3) % N])
    dst = np.concatenate([(ar + 1) % N, ar, ar])
    adj = np.zeros((N, N), np.float32)
    adj[dst, src] = 1.0
    adj_sl = adj + np.eye(N, dtype=np.float32)
    dinv = 1.0 / np.sqrt(adj_sl.sum(axis=1))
    a_hat = jnp.asarray(dinv[:, None] * adj_sl * dinv[None, :])

    # `batch` vector of the PyTorch forward (node -> graph id); equal-sized graphs, so
    # global_mean_pool is exactly the per-graph node mean the kernel computes.
    batch = jnp.repeat(jnp.arange(BS), N)

    key = jax.random.PRNGKey(0)
    ks = jax.random.split(key, 9)
    rnd = lambda k, shp, s=0.2: s * jax.random.normal(k, shp, jnp.float32)
    prm = {
        # all dense weights stored as (in, out) = PyTorch Linear weight transposed
        "w1": rnd(ks[0], (F, H)), "b1": rnd(ks[1], (H,)),
        "w2": rnd(ks[2], (H, H)), "b2": rnd(ks[3], (H,)),
        "l1w": rnd(ks[4], (NUM_LAYERS * H, HFC)), "l1b": rnd(ks[5], (HFC,)),
        "l2w": rnd(ks[6], (HFC, C)), "l2b": rnd(ks[7], (C,)),
    }
    x = jax.random.normal(ks[8], (BS, N, F), jnp.float32)

    y_ref = reference_forward(x, batch, a_hat, prm)

    # ---- f32 compute path (exactness check) ----
    packed_f32 = pack_gcn_pooled_params(prm, a_hat, TB, jnp.float32)
    y_f32 = gcn_model_pooled_forward(x, packed_f32)
    jax.block_until_ready(y_f32)
    np.testing.assert_allclose(np.asarray(y_f32), np.asarray(y_ref), atol=1e-4, rtol=1e-4)

    # ---- bf16 compute path (default for all TPU generations; f32 MXU accumulation) ----
    packed_bf16 = pack_gcn_pooled_params(prm, a_hat, TB, jnp.bfloat16)
    y_bf16 = gcn_model_pooled_forward(x, packed_bf16)
    jax.block_until_ready(y_bf16)
    np.testing.assert_allclose(np.asarray(y_bf16), np.asarray(y_ref), atol=5e-2, rtol=5e-2)

    print("KERNEL_OK")
</pallas_src>

<mosaic_0001>
module attributes {stable_mosaic.version = 11 : i64} {
  func.func @kernel(%arg0: i32, %arg1: memref<1x16x128xf32, #tpu.memory_space<vmem>>, %arg2: memref<16x16xf32, #tpu.memory_space<vmem>>, %arg3: memref<256x128xf32, #tpu.memory_space<vmem>>, %arg4: memref<288x32xf32, #tpu.memory_space<vmem>>, %arg5: memref<4x128xf32, #tpu.memory_space<vmem>>, %arg6: memref<16x256xf32, #tpu.memory_space<vmem>>, %arg7: memref<1x16x3xf32, #tpu.memory_space<vmem>>) attributes {dimension_semantics = [#tpu.dimension_semantics<parallel>], iteration_bounds = array<i64: 4>, scalar_prefetch = 0 : i64, scratch_operands = 0 : i64, tpu.core_type = #tpu.core_type<tc>, window_params = [{transform_indices = @transform_0, window_bounds = array<i64: 1, 16, 128>}, {pipeline_mode = #tpu.pipeline_mode<synchronous>, transform_indices = @transform_1, window_bounds = array<i64: 16, 16>}, {pipeline_mode = #tpu.pipeline_mode<synchronous>, transform_indices = @transform_2, window_bounds = array<i64: 256, 128>}, {pipeline_mode = #tpu.pipeline_mode<synchronous>, transform_indices = @transform_3, window_bounds = array<i64: 288, 32>}, {pipeline_mode = #tpu.pipeline_mode<synchronous>, transform_indices = @transform_4, window_bounds = array<i64: 4, 128>}, {pipeline_mode = #tpu.pipeline_mode<synchronous>, transform_indices = @transform_5, window_bounds = array<i64: 16, 256>}, {transform_indices = @transform_6, window_bounds = array<i64: 1, 16, 3>}]} {
    %c0 = arith.constant 0 : index
    %c0_0 = arith.constant 0 : index
    %c0_1 = arith.constant 0 : index
    %0 = vector.load %arg1[%c0, %c0_0, %c0_1] : memref<1x16x128xf32, #tpu.memory_space<vmem>>, vector<1x16x128xf32>
    %1 = vector.shape_cast %0 : vector<1x16x128xf32> to vector<16x128xf32>
    %c0_2 = arith.constant 0 : index
    %c0_3 = arith.constant 0 : index
    %2 = vector.load %arg2[%c0_2, %c0_3] : memref<16x16xf32, #tpu.memory_space<vmem>>, vector<16x16xf32>
    %c0_4 = arith.constant 0 : index
    %c0_5 = arith.constant 0 : index
    %3 = vector.load %arg3[%c0_4, %c0_5] : memref<256x128xf32, #tpu.memory_space<vmem>>, vector<128x128xf32>
    %c128 = arith.constant 128 : index
    %c0_6 = arith.constant 0 : index
    %4 = vector.load %arg3[%c128, %c0_6] : memref<256x128xf32, #tpu.memory_space<vmem>>, vector<128x128xf32>
    %c0_7 = arith.constant 0 : index
    %c0_8 = arith.constant 0 : index
    %5 = vector.load %arg4[%c0_7, %c0_8] : memref<288x32xf32, #tpu.memory_space<vmem>>, vector<256x32xf32>
    %c256 = arith.constant 256 : index
    %c0_9 = arith.constant 0 : index
    %6 = vector.load %arg4[%c256, %c0_9] : memref<288x32xf32, #tpu.memory_space<vmem>>, vector<32x3xf32>
    %c0_10 = arith.constant 0 : index
    %c0_11 = arith.constant 0 : index
    %7 = vector.load %arg5[%c0_10, %c0_11] : memref<4x128xf32, #tpu.memory_space<vmem>>, vector<1x128xf32>
    %c1 = arith.constant 1 : index
    %c0_12 = arith.constant 0 : index
    %8 = vector.load %arg5[%c1, %c0_12] : memref<4x128xf32, #tpu.memory_space<vmem>>, vector<1x128xf32>
    %c2 = arith.constant 2 : index
    %c0_13 = arith.constant 0 : index
    %9 = vector.load %arg5[%c2, %c0_13] : memref<4x128xf32, #tpu.memory_space<vmem>>, vector<1x32xf32>
    %c3 = arith.constant 3 : index
    %c0_14 = arith.constant 0 : index
    %10 = vector.load %arg5[%c3, %c0_14] : memref<4x128xf32, #tpu.memory_space<vmem>>, vector<1x3xf32>
    %c0_15 = arith.constant 0 : index
    %c0_16 = arith.constant 0 : index
    %11 = vector.load %arg6[%c0_15, %c0_16] : memref<16x256xf32, #tpu.memory_space<vmem>>, vector<16x256xf32>
    %cst = arith.constant dense<0.000000e+00> : vector<16x128xf32>
    %12 = tpu.matmul %1, %3, %cst {dimension_numbers = #tpu.dot_dimension_numbers<[1], [0], [0], [1], [0, 0, 1, 1], [], []>} : vector<16x128xf32>, vector<128x128xf32>, vector<16x128xf32> -> vector<16x128xf32>
    %cst_17 = arith.constant dense<0.000000e+00> : vector<16x128xf32>
    %13 = tpu.matmul %2, %12, %cst_17 {dimension_numbers = #tpu.dot_dimension_numbers<[1], [0], [0], [1], [0, 0, 1, 1], [], []>} : vector<16x16xf32>, vector<16x128xf32>, vector<16x128xf32> -> vector<16x128xf32>
    %14 = vector.broadcast %7 : vector<1x128xf32> to vector<16x128xf32>
    %15 = arith.addf %13, %14 : vector<16x128xf32>
    %cst_18 = arith.constant 0.000000e+00 : f32
    %16 = vector.broadcast %cst_18 : f32 to vector<16x128xf32>
    %17 = arith.maximumf %15, %16 : vector<16x128xf32>
    %cst_19 = arith.constant dense<0.000000e+00> : vector<16x128xf32>
    %18 = tpu.matmul %17, %4, %cst_19 {dimension_numbers = #tpu.dot_dimension_numbers<[1], [0], [0], [1], [0, 0, 1, 1], [], []>} : vector<16x128xf32>, vector<128x128xf32>, vector<16x128xf32> -> vector<16x128xf32>
    %cst_20 = arith.constant dense<0.000000e+00> : vector<16x128xf32>
    %19 = tpu.matmul %2, %18, %cst_20 {dimension_numbers = #tpu.dot_dimension_numbers<[1], [0], [0], [1], [0, 0, 1, 1], [], []>} : vector<16x16xf32>, vector<16x128xf32>, vector<16x128xf32> -> vector<16x128xf32>
    %20 = vector.broadcast %8 : vector<1x128xf32> to vector<16x128xf32>
    %21 = arith.addf %19, %20 : vector<16x128xf32>
    %cst_21 = arith.constant 0.000000e+00 : f32
    %22 = vector.broadcast %cst_21 : f32 to vector<16x128xf32>
    %23 = arith.maximumf %21, %22 : vector<16x128xf32>
    %cst_22 = arith.constant 1.000000e+00 : f32
    %24 = vector.broadcast %cst_22 : f32 to vector<1x16xf32>
    %cst_23 = arith.constant dense<0.000000e+00> : vector<1x128xf32>
    %25 = tpu.matmul %24, %17, %cst_23 {dimension_numbers = #tpu.dot_dimension_numbers<[1], [0], [0], [1], [0, 0, 1, 1], [], []>} : vector<1x16xf32>, vector<16x128xf32>, vector<1x128xf32> -> vector<1x128xf32>
    %cst_24 = arith.constant 6.250000e-02 : f32
    %26 = vector.broadcast %cst_24 : f32 to vector<1x128xf32>
    %27 = arith.mulf %25, %26 : vector<1x128xf32>
    %cst_25 = arith.constant dense<0.000000e+00> : vector<1x128xf32>
    %28 = tpu.matmul %24, %23, %cst_25 {dimension_numbers = #tpu.dot_dimension_numbers<[1], [0], [0], [1], [0, 0, 1, 1], [], []>} : vector<1x16xf32>, vector<16x128xf32>, vector<1x128xf32> -> vector<1x128xf32>
    %cst_26 = arith.constant 6.250000e-02 : f32
    %29 = vector.broadcast %cst_26 : f32 to vector<1x128xf32>
    %30 = arith.mulf %28, %29 : vector<1x128xf32>
    %31 = tpu.concatenate %27, %30 in 1 : vector<1x128xf32>, vector<1x128xf32> -> vector<1x256xf32>
    %32 = vector.shape_cast %31 : vector<1x256xf32> to vector<1x256xf32>
    %33 = vector.broadcast %32 : vector<1x256xf32> to vector<16x256xf32>
    %34 = arith.mulf %33, %11 : vector<16x256xf32>
    %cst_27 = arith.constant dense<0.000000e+00> : vector<16x32xf32>
    %35 = tpu.matmul %34, %5, %cst_27 {dimension_numbers = #tpu.dot_dimension_numbers<[1], [0], [0], [1], [0, 0, 1, 1], [], []>} : vector<16x256xf32>, vector<256x32xf32>, vector<16x32xf32> -> vector<16x32xf32>
    %36 = vector.broadcast %9 : vector<1x32xf32> to vector<16x32xf32>
    %37 = arith.addf %35, %36 : vector<16x32xf32>
    %cst_28 = arith.constant 0.000000e+00 : f32
    %38 = vector.broadcast %cst_28 : f32 to vector<16x32xf32>
    %39 = arith.maximumf %37, %38 : vector<16x32xf32>
    %cst_29 = arith.constant dense<0.000000e+00> : vector<16x3xf32>
    %40 = tpu.matmul %39, %6, %cst_29 {dimension_numbers = #tpu.dot_dimension_numbers<[1], [0], [0], [1], [0, 0, 1, 1], [], []>} : vector<16x32xf32>, vector<32x3xf32>, vector<16x3xf32> -> vector<16x3xf32>
    %41 = vector.broadcast %10 : vector<1x3xf32> to vector<16x3xf32>
    %42 = arith.addf %40, %41 : vector<16x3xf32>
    %cst_30 = arith.constant dense<0xFF800000> : vector<16xf32>
    %43 = vector.multi_reduction <maximumf>, %42, %cst_30 [1] : vector<16x3xf32> to vector<16xf32>
    %44 = vector.shape_cast %43 : vector<16xf32> to vector<16x1xf32>
    %45 = vector.broadcast %44 : vector<16x1xf32> to vector<16x3xf32>
    %46 = arith.subf %42, %45 : vector<16x3xf32>
    %47 = math.exp %46 : vector<16x3xf32>
    %cst_31 = arith.constant dense<0.000000e+00> : vector<16xf32>
    %48 = vector.multi_reduction <add>, %47, %cst_31 [1] : vector<16x3xf32> to vector<16xf32>
    %49 = vector.shape_cast %48 : vector<16xf32> to vector<16x1xf32>
    %50 = math.log %49 : vector<16x1xf32>
    %51 = arith.addf %50, %44 : vector<16x1xf32>
    %52 = vector.broadcast %51 : vector<16x1xf32> to vector<16x3xf32>
    %53 = arith.subf %42, %52 : vector<16x3xf32>
    %c0_32 = arith.constant 0 : index
    %c0_33 = arith.constant 0 : index
    %c0_34 = arith.constant 0 : index
    %54 = vector.load %arg7[%c0_32, %c0_33, %c0_34] : memref<1x16x3xf32, #tpu.memory_space<vmem>>, vector<1x16x3xf32>
    %55 = vector.shape_cast %54 : vector<1x16x3xf32> to vector<16x3xf32>
    %56 = vector.shape_cast %53 : vector<16x3xf32> to vector<1x16x3xf32>
    tpu.vector_store %arg7[%c0_32, %c0_33, %c0_34], %56 {strides = array<i32>} : memref<1x16x3xf32, #tpu.memory_space<vmem>>, vector<1x16x3xf32>,
    return
  }
  func.func @transform_0(%arg0: i32) -> (i32, i32, i32) {
    %c0_i32 = arith.constant 0 : i32
    %c0_i32_0 = arith.constant 0 : i32
    %c0_i32_1 = arith.constant 0 : i32
    return %arg0, %c0_i32, %c0_i32_0 : i32, i32, i32
  }
  func.func @transform_1(%arg0: i32) -> (i32, i32) {
    %c0_i32 = arith.constant 0 : i32
    %c0_i32_0 = arith.constant 0 : i32
    %c0_i32_1 = arith.constant 0 : i32
    return %c0_i32, %c0_i32_0 : i32, i32
  }
  func.func @transform_2(%arg0: i32) -> (i32, i32) {
    %c0_i32 = arith.constant 0 : i32
    %c0_i32_0 = arith.constant 0 : i32
    %c0_i32_1 = arith.constant 0 : i32
    return %c0_i32, %c0_i32_0 : i32, i32
  }
  func.func @transform_3(%arg0: i32) -> (i32, i32) {
    %c0_i32 = arith.constant 0 : i32
    %c0_i32_0 = arith.constant 0 : i32
    %c0_i32_1 = arith.constant 0 : i32
    return %c0_i32, %c0_i32_0 : i32, i32
  }
  func.func @transform_4(%arg0: i32) -> (i32, i32) {
    %c0_i32 = arith.constant 0 : i32
    %c0_i32_0 = arith.constant 0 : i32
    %c0_i32_1 = arith.constant 0 : i32
    return %c0_i32, %c0_i32_0 : i32, i32
  }
  func.func @transform_5(%arg0: i32) -> (i32, i32) {
    %c0_i32 = arith.constant 0 : i32
    %c0_i32_0 = arith.constant 0 : i32
    %c0_i32_1 = arith.constant 0 : i32
    return %c0_i32, %c0_i32_0 : i32, i32
  }
  func.func @transform_6(%arg0: i32) -> (i32, i32, i32) {
    %c0_i32 = arith.constant 0 : i32
    %c0_i32_0 = arith.constant 0 : i32
    %c0_i32_1 = arith.constant 0 : i32
    return %arg0, %c0_i32, %c0_i32_0 : i32, i32, i32
  }
}

module attributes {stable_mosaic.version = 11 : i64} {
  func.func @kernel(%arg0: i32, %arg1: memref<1x16x128xf32, #tpu.memory_space<vmem>>, %arg2: memref<16x16xf32, #tpu.memory_space<vmem>>, %arg3: memref<256x128xf32, #tpu.memory_space<vmem>>, %arg4: memref<288x32xf32, #tpu.memory_space<vmem>>, %arg5: memref<4x128xf32, #tpu.memory_space<vmem>>, %arg6: memref<16x256xf32, #tpu.memory_space<vmem>>, %arg7: memref<1x16x3xf32, #tpu.memory_space<vmem>>) attributes {dimension_semantics = [#tpu.dimension_semantics<parallel>], iteration_bounds = array<i64: 4>, scalar_prefetch = 0 : i64, scratch_operands = 0 : i64, tpu.core_type = #tpu.core_type<tc>, window_params = [{transform_indices = @transform_0, window_bounds = array<i64: 1, 16, 128>}, {pipeline_mode = #tpu.pipeline_mode<synchronous>, transform_indices = @transform_1, window_bounds = array<i64: 16, 16>}, {pipeline_mode = #tpu.pipeline_mode<synchronous>, transform_indices = @transform_2, window_bounds = array<i64: 256, 128>}, {pipeline_mode = #tpu.pipeline_mode<synchronous>, transform_indices = @transform_3, window_bounds = array<i64: 288, 32>}, {pipeline_mode = #tpu.pipeline_mode<synchronous>, transform_indices = @transform_4, window_bounds = array<i64: 4, 128>}, {pipeline_mode = #tpu.pipeline_mode<synchronous>, transform_indices = @transform_5, window_bounds = array<i64: 16, 256>}, {transform_indices = @transform_6, window_bounds = array<i64: 1, 16, 3>}]} {
    %c0 = arith.constant 0 : index
    %c0_0 = arith.constant 0 : index
    %c0_1 = arith.constant 0 : index
    %0 = vector.load %arg1[%c0, %c0_0, %c0_1] : memref<1x16x128xf32, #tpu.memory_space<vmem>>, vector<1x16x128xf32>
    %1 = vector.shape_cast %0 : vector<1x16x128xf32> to vector<16x128xf32>
    %c0_2 = arith.constant 0 : index
    %c0_3 = arith.constant 0 : index
    %2 = vector.load %arg2[%c0_2, %c0_3] : memref<16x16xf32, #tpu.memory_space<vmem>>, vector<16x16xf32>
    %c0_4 = arith.constant 0 : index
    %c0_5 = arith.constant 0 : index
    %3 = vector.load %arg3[%c0_4, %c0_5] : memref<256x128xf32, #tpu.memory_space<vmem>>, vector<128x128xf32>
    %c128 = arith.constant 128 : index
    %c0_6 = arith.constant 0 : index
    %4 = vector.load %arg3[%c128, %c0_6] : memref<256x128xf32, #tpu.memory_space<vmem>>, vector<128x128xf32>
    %c0_7 = arith.constant 0 : index
    %c0_8 = arith.constant 0 : index
    %5 = vector.load %arg4[%c0_7, %c0_8] : memref<288x32xf32, #tpu.memory_space<vmem>>, vector<256x32xf32>
    %c256 = arith.constant 256 : index
    %c0_9 = arith.constant 0 : index
    %6 = vector.load %arg4[%c256, %c0_9] : memref<288x32xf32, #tpu.memory_space<vmem>>, vector<32x3xf32>
    %c0_10 = arith.constant 0 : index
    %c0_11 = arith.constant 0 : index
    %7 = vector.load %arg5[%c0_10, %c0_11] : memref<4x128xf32, #tpu.memory_space<vmem>>, vector<1x128xf32>
    %c1 = arith.constant 1 : index
    %c0_12 = arith.constant 0 : index
    %8 = vector.load %arg5[%c1, %c0_12] : memref<4x128xf32, #tpu.memory_space<vmem>>, vector<1x128xf32>
    %c2 = arith.constant 2 : index
    %c0_13 = arith.constant 0 : index
    %9 = vector.load %arg5[%c2, %c0_13] : memref<4x128xf32, #tpu.memory_space<vmem>>, vector<1x32xf32>
    %c3 = arith.constant 3 : index
    %c0_14 = arith.constant 0 : index
    %10 = vector.load %arg5[%c3, %c0_14] : memref<4x128xf32, #tpu.memory_space<vmem>>, vector<1x3xf32>
    %c0_15 = arith.constant 0 : index
    %c0_16 = arith.constant 0 : index
    %11 = vector.load %arg6[%c0_15, %c0_16] : memref<16x256xf32, #tpu.memory_space<vmem>>, vector<16x256xf32>
    %cst = arith.constant dense<0.000000e+00> : vector<16x128xf32>
    %12 = tpu.matmul %1, %3, %cst {dimension_numbers = #tpu.dot_dimension_numbers<[1], [0], [0], [1], [0, 0, 1, 1], [], []>} : vector<16x128xf32>, vector<128x128xf32>, vector<16x128xf32> -> vector<16x128xf32>
    %cst_17 = arith.constant dense<0.000000e+00> : vector<16x128xf32>
    %13 = tpu.matmul %2, %12, %cst_17 {dimension_numbers = #tpu.dot_dimension_numbers<[1], [0], [0], [1], [0, 0, 1, 1], [], []>} : vector<16x16xf32>, vector<16x128xf32>, vector<16x128xf32> -> vector<16x128xf32>
    %14 = vector.broadcast %7 : vector<1x128xf32> to vector<16x128xf32>
    %15 = arith.addf %13, %14 : vector<16x128xf32>
    %cst_18 = arith.constant 0.000000e+00 : f32
    %16 = vector.broadcast %cst_18 : f32 to vector<16x128xf32>
    %17 = arith.maximumf %15, %16 : vector<16x128xf32>
    %cst_19 = arith.constant dense<0.000000e+00> : vector<16x128xf32>
    %18 = tpu.matmul %17, %4, %cst_19 {dimension_numbers = #tpu.dot_dimension_numbers<[1], [0], [0], [1], [0, 0, 1, 1], [], []>} : vector<16x128xf32>, vector<128x128xf32>, vector<16x128xf32> -> vector<16x128xf32>
    %cst_20 = arith.constant dense<0.000000e+00> : vector<16x128xf32>
    %19 = tpu.matmul %2, %18, %cst_20 {dimension_numbers = #tpu.dot_dimension_numbers<[1], [0], [0], [1], [0, 0, 1, 1], [], []>} : vector<16x16xf32>, vector<16x128xf32>, vector<16x128xf32> -> vector<16x128xf32>
    %20 = vector.broadcast %8 : vector<1x128xf32> to vector<16x128xf32>
    %21 = arith.addf %19, %20 : vector<16x128xf32>
    %cst_21 = arith.constant 0.000000e+00 : f32
    %22 = vector.broadcast %cst_21 : f32 to vector<16x128xf32>
    %23 = arith.maximumf %21, %22 : vector<16x128xf32>
    %cst_22 = arith.constant 1.000000e+00 : f32
    %24 = vector.broadcast %cst_22 : f32 to vector<1x16xf32>
    %cst_23 = arith.constant dense<0.000000e+00> : vector<1x128xf32>
    %25 = tpu.matmul %24, %17, %cst_23 {dimension_numbers = #tpu.dot_dimension_numbers<[1], [0], [0], [1], [0, 0, 1, 1], [], []>} : vector<1x16xf32>, vector<16x128xf32>, vector<1x128xf32> -> vector<1x128xf32>
    %cst_24 = arith.constant 6.250000e-02 : f32
    %26 = vector.broadcast %cst_24 : f32 to vector<1x128xf32>
    %27 = arith.mulf %25, %26 : vector<1x128xf32>
    %cst_25 = arith.constant dense<0.000000e+00> : vector<1x128xf32>
    %28 = tpu.matmul %24, %23, %cst_25 {dimension_numbers = #tpu.dot_dimension_numbers<[1], [0], [0], [1], [0, 0, 1, 1], [], []>} : vector<1x16xf32>, vector<16x128xf32>, vector<1x128xf32> -> vector<1x128xf32>
    %cst_26 = arith.constant 6.250000e-02 : f32
    %29 = vector.broadcast %cst_26 : f32 to vector<1x128xf32>
    %30 = arith.mulf %28, %29 : vector<1x128xf32>
    %31 = tpu.concatenate %27, %30 in 1 : vector<1x128xf32>, vector<1x128xf32> -> vector<1x256xf32>
    %32 = vector.shape_cast %31 : vector<1x256xf32> to vector<1x256xf32>
    %33 = vector.broadcast %32 : vector<1x256xf32> to vector<16x256xf32>
    %34 = arith.mulf %33, %11 : vector<16x256xf32>
    %cst_27 = arith.constant dense<0.000000e+00> : vector<16x32xf32>
    %35 = tpu.matmul %34, %5, %cst_27 {dimension_numbers = #tpu.dot_dimension_numbers<[1], [0], [0], [1], [0, 0, 1, 1], [], []>} : vector<16x256xf32>, vector<256x32xf32>, vector<16x32xf32> -> vector<16x32xf32>
    %36 = vector.broadcast %9 : vector<1x32xf32> to vector<16x32xf32>
    %37 = arith.addf %35, %36 : vector<16x32xf32>
    %cst_28 = arith.constant 0.000000e+00 : f32
    %38 = vector.broadcast %cst_28 : f32 to vector<16x32xf32>
    %39 = arith.maximumf %37, %38 : vector<16x32xf32>
    %cst_29 = arith.constant dense<0.000000e+00> : vector<16x3xf32>
    %40 = tpu.matmul %39, %6, %cst_29 {dimension_numbers = #tpu.dot_dimension_numbers<[1], [0], [0], [1], [0, 0, 1, 1], [], []>} : vector<16x32xf32>, vector<32x3xf32>, vector<16x3xf32> -> vector<16x3xf32>
    %41 = vector.broadcast %10 : vector<1x3xf32> to vector<16x3xf32>
    %42 = arith.addf %40, %41 : vector<16x3xf32>
    %cst_30 = arith.constant dense<0xFF800000> : vector<16xf32>
    %43 = vector.multi_reduction <maximumf>, %42, %cst_30 [1] : vector<16x3xf32> to vector<16xf32>
    %44 = vector.shape_cast %43 : vector<16xf32> to vector<16x1xf32>
    %45 = vector.broadcast %44 : vector<16x1xf32> to vector<16x3xf32>
    %46 = arith.subf %42, %45 : vector<16x3xf32>
    %47 = math.exp %46 : vector<16x3xf32>
    %cst_31 = arith.constant dense<0.000000e+00> : vector<16xf32>
    %48 = vector.multi_reduction <add>, %47, %cst_31 [1] : vector<16x3xf32> to vector<16xf32>
    %49 = vector.shape_cast %48 : vector<16xf32> to vector<16x1xf32>
    %50 = math.log %49 : vector<16x1xf32>
    %51 = arith.addf %50, %44 : vector<16x1xf32>
    %52 = vector.broadcast %51 : vector<16x1xf32> to vector<16x3xf32>
    %53 = arith.subf %42, %52 : vector<16x3xf32>
    %c0_32 = arith.constant 0 : index
    %c0_33 = arith.constant 0 : index
    %c0_34 = arith.constant 0 : index
    %54 = vector.load %arg7[%c0_32, %c0_33, %c0_34] : memref<1x16x3xf32, #tpu.memory_space<vmem>>, vector<1x16x3xf32>
    %55 = vector.shape_cast %54 : vector<1x16x3xf32> to vector<16x3xf32>
    %56 = vector.shape_cast %53 : vector<16x3xf32> to vector<1x16x3xf32>
    tpu.vector_store %arg7[%c0_32, %c0_33, %c0_34], %56 {strides = array<i32>} : memref<1x16x3xf32, #tpu.memory_space<vmem>>, vector<1x16x3xf32>,
    return
  }
  func.func @transform_0(%arg0: i32) -> (i32, i32, i32) {
    %c0_i32 = arith.constant 0 : i32
    %c0_i32_0 = arith.constant 0 : i32
    %c0_i32_1 = arith.constant 0 : i32
    return %arg0, %c0_i32, %c0_i32_0 : i32, i32, i32
  }
  func.func @transform_1(%arg0: i32) -> (i32, i32) {
    %c0_i32 = arith.constant 0 : i32
    %c0_i32_0 = arith.constant 0 : i32
    %c0_i32_1 = arith.constant 0 : i32
    return %c0_i32, %c0_i32_0 : i32, i32
  }
  func.func @transform_2(%arg0: i32) -> (i32, i32) {
    %c0_i32 = arith.constant 0 : i32
    %c0_i32_0 = arith.constant 0 : i32
    %c0_i32_1 = arith.constant 0 : i32
    return %c0_i32, %c0_i32_0 : i32, i32
  }
  func.func @transform_3(%arg0: i32) -> (i32, i32) {
    %c0_i32 = arith.constant 0 : i32
    %c0_i32_0 = arith.constant 0 : i32
    %c0_i32_1 = arith.constant 0 : i32
    return %c0_i32, %c0_i32_0 : i32, i32
  }
  func.func @transform_4(%arg0: i32) -> (i32, i32) {
    %c0_i32 = arith.constant 0 : i32
    %c0_i32_0 = arith.constant 0 : i32
    %c0_i32_1 = arith.constant 0 : i32
    return %c0_i32, %c0_i32_0 : i32, i32
  }
  func.func @transform_5(%arg0: i32) -> (i32, i32) {
    %c0_i32 = arith.constant 0 : i32
    %c0_i32_0 = arith.constant 0 : i32
    %c0_i32_1 = arith.constant 0 : i32
    return %c0_i32, %c0_i32_0 : i32, i32
  }
  func.func @transform_6(%arg0: i32) -> (i32, i32, i32) {
    %c0_i32 = arith.constant 0 : i32
    %c0_i32_0 = arith.constant 0 : i32
    %c0_i32_1 = arith.constant 0 : i32
    return %arg0, %c0_i32, %c0_i32_0 : i32, i32, i32
  }
}

</mosaic_0001>

<llo_original>
// kernel: tpu_custom_call.1
$region0: #{tpu_custom_call.1}
  #allocation0 [shape = 'u32[]', space=smem, size = 0x4, offset = 0x4, fixed_abs, tag = 'smem constant byte address 0x4 - core index']
  #allocation1 [shape = 'u32[144,128]{1,0:T(1,128)}', space=vmem, size = 0x12000, scoped, tag = 'internal scratch']
  %s0 = inlined_call_operand.vmem [shape: f32[4,16,128], index: 0, kind: input, shape index: {}]
  %s1 = inlined_call_operand.vmem [shape: f32[16,16], index: 1, kind: input, shape index: {}]
  %s2 = inlined_call_operand.vmem [shape: f32[256,128], index: 2, kind: input, shape index: {}]
  %s3 = inlined_call_operand.vmem [shape: f32[288,32], index: 3, kind: input, shape index: {}]
  %s4 = inlined_call_operand.vmem [shape: f32[4,128], index: 4, kind: input, shape index: {}]
  %s5 = inlined_call_operand.vmem [shape: f32[16,256], index: 5, kind: input, shape index: {}]
  %s6 = inlined_call_operand.vmem [shape: f32[4,16,3], index: 6, kind: output, shape index: {}]
  %s7 = sld [smem:[#allocation0]]
  $region57: #{tpu_custom_call.1} parent=0
    _
  %s9 = ssub.s32 1, %s7
  %s10 = scalar_select 0, %s9, %s7
  loop: start=0, step=1, limit=6
  $region2: #{tpu_custom_call.1} parent=0 // loop_pre_header
    _
  $region3: #{tpu_custom_call.1} parent=0 // loop_header
    %s12 = sphi 0, %s16
    %p13 = scmp.ge.s32.totalorder %s12, 6
    %s22 = sphi 0, %s24
    %s25 = sphi 0, %s22
    %s26 = sphi 0, %s25
    %s42 = sphi 0, %s26
    %s46 = sphi 0, %s46
    %s48 = sphi 0, %s46
    %s49 = sphi 0, %s48
    %s63 = sphi 0, %s49
    %s67 = sphi 0, %s67
    %s69 = sphi 0, %s67
    %s70 = sphi 0, %s69
    %s84 = sphi 0, %s70
    %s88 = sphi 0, %s88
    %s90 = sphi 0, %s88
    %s91 = sphi 0, %s90
    %s105 = sphi 0, %s91
    %s109 = sphi 0, %s109
    %s111 = sphi 0, %s109
    %s112 = sphi 0, %s111
    %s126 = sphi 0, %s112
    %s130 = sphi 0, %s130
    %s132 = sphi 0, %s130
    %s133 = sphi 0, %s132
    %s147 = sphi 0, %s133
    %s153 = sphi 0, %s155
    %s156 = sphi 0, %s153
    %s157 = sphi 0, %s156
    %s173 = sphi 0, %s157
  $region4: #{tpu_custom_call.1} parent=0 // loop_header_branch
    %15 = sbr.rel (%p13) target = $region8
  $region5: #{tpu_custom_call.1} parent=0 // loop_body
    %s17 = ssub.s32 %s12, 1
    %s18 = ssub.s32 %s12, 2
    %s19 = sadd.s32 %s12, 1
    %s20 = ssub.s32 %s12, %s19
    %p21 = scmp.eq.s32.totalorder %s20, 0
    %s23 = sadd.s32 %s22, 1
    %s24 = scalar_select %p21, %s22, %s23
    %p27 = pneg %p21
    %p28 = scmp.eq.s32.totalorder %s12, 3
    %p29 = por %p27, %p28
    %p30 = scmp.ne.s32.totalorder %s22, %s25
    %p31 = scmp.eq.s32.totalorder %s12, 0
    %p32 = por %p30, %p31
    %p33 = scmp.ne.s32.totalorder %s22, %s25
    %p34 = scmp.eq.s32.totalorder %s17, 3
    %p35 = por %p33, %p34
    %p36 = scmp.ne.s32.totalorder %s25, %s26
    %p37 = scmp.eq.s32.totalorder %s17, 0
    %p38 = por %p36, %p37
    %p39 = scmp.ne.s32.totalorder %s25, %s26
    %p40 = scmp.eq.s32.totalorder %s18, 3
    %p41 = por %p39, %p40
    %p43 = scmp.ne.s32.totalorder %s26, %s42
    %p44 = scmp.eq.s32.totalorder %s18, 0
    %p45 = por %p43, %p44
    %s47 = sadd.s32 %s46, 1
    %p50 = scmp.eq.s32.totalorder %s12, 3
    %p51 = scmp.ne.s32.totalorder %s46, %s48
    %p52 = scmp.eq.s32.totalorder %s12, 0
    %p53 = por %p51, %p52
    %p54 = scmp.ne.s32.totalorder %s46, %s48
    %p55 = scmp.eq.s32.totalorder %s17, 3
    %p56 = por %p54, %p55
    %p57 = scmp.ne.s32.totalorder %s48, %s49
    %p58 = scmp.eq.s32.totalorder %s17, 0
    %p59 = por %p57, %p58
    %p60 = scmp.ne.s32.totalorder %s48, %s49
    %p61 = scmp.eq.s32.totalorder %s18, 3
    %p62 = por %p60, %p61
    %p64 = scmp.ne.s32.totalorder %s49, %s63
    %p65 = scmp.eq.s32.totalorder %s18, 0
    %p66 = por %p64, %p65
    %s68 = sadd.s32 %s67, 1
    %p71 = scmp.eq.s32.totalorder %s12, 3
    %p72 = scmp.ne.s32.totalorder %s67, %s69
    %p73 = scmp.eq.s32.totalorder %s12, 0
    %p74 = por %p72, %p73
    %p75 = scmp.ne.s32.totalorder %s67, %s69
    %p76 = scmp.eq.s32.totalorder %s17, 3
    %p77 = por %p75, %p76
    %p78 = scmp.ne.s32.totalorder %s69, %s70
    %p79 = scmp.eq.s32.totalorder %s17, 0
    %p80 = por %p78, %p79
    %p81 = scmp.ne.s32.totalorder %s69, %s70
    %p82 = scmp.eq.s32.totalorder %s18, 3
    %p83 = por %p81, %p82
    %p85 = scmp.ne.s32.totalorder %s70, %s84
    %p86 = scmp.eq.s32.totalorder %s18, 0
    %p87 = por %p85, %p86
    %s89 = sadd.s32 %s88, 1
    %p92 = scmp.eq.s32.totalorder %s12, 3
    %p93 = scmp.ne.s32.totalorder %s88, %s90
    %p94 = scmp.eq.s32.totalorder %s12, 0
    %p95 = por %p93, %p94
    %p96 = scmp.ne.s32.totalorder %s88, %s90
    %p97 = scmp.eq.s32.totalorder %s17, 3
    %p98 = por %p96, %p97
    %p99 = scmp.ne.s32.totalorder %s90, %s91
    %p100 = scmp.eq.s32.totalorder %s17, 0
    %p101 = por %p99, %p100
    %p102 = scmp.ne.s32.totalorder %s90, %s91
    %p103 = scmp.eq.s32.totalorder %s18, 3
    %p104 = por %p102, %p103
    %p106 = scmp.ne.s32.totalorder %s91, %s105
    %p107 = scmp.eq.s32.totalorder %s18, 0
    %p108 = por %p106, %p107
    %s110 = sadd.s32 %s109, 1
    %p113 = scmp.eq.s32.totalorder %s12, 3
    %p114 = scmp.ne.s32.totalorder %s109, %s111
    %p115 = scmp.eq.s32.totalorder %s12, 0
    %p116 = por %p114, %p115
    %p117 = scmp.ne.s32.totalorder %s109, %s111
    %p118 = scmp.eq.s32.totalorder %s17, 3
    %p119 = por %p117, %p118
    %p120 = scmp.ne.s32.totalorder %s111, %s112
    %p121 = scmp.eq.s32.totalorder %s17, 0
    %p122 = por %p120, %p121
    %p123 = scmp.ne.s32.totalorder %s111, %s112
    %p124 = scmp.eq.s32.totalorder %s18, 3
    %p125 = por %p123, %p124
    %p127 = scmp.ne.s32.totalorder %s112, %s126
    %p128 = scmp.eq.s32.totalorder %s18, 0
    %p129 = por %p127, %p128
    %s131 = sadd.s32 %s130, 1
    %p134 = scmp.eq.s32.totalorder %s12, 3
    %p135 = scmp.ne.s32.totalorder %s130, %s132
    %p136 = scmp.eq.s32.totalorder %s12, 0
    %p137 = por %p135, %p136
    %p138 = scmp.ne.s32.totalorder %s130, %s132
    %p139 = scmp.eq.s32.totalorder %s17, 3
    %p140 = por %p138, %p139
    %p141 = scmp.ne.s32.totalorder %s132, %s133
    %p142 = scmp.eq.s32.totalorder %s17, 0
    %p143 = por %p141, %p142
    %p144 = scmp.ne.s32.totalorder %s132, %s133
    %p145 = scmp.eq.s32.totalorder %s18, 3
    %p146 = por %p144, %p145
    %p148 = scmp.ne.s32.totalorder %s133, %s147
    %p149 = scmp.eq.s32.totalorder %s18, 0
    %p150 = por %p148, %p149
    %s151 = ssub.s32 %s12, %s19
    %p152 = scmp.eq.s32.totalorder %s151, 0
    %s154 = sadd.s32 %s153, 1
    %s155 = scalar_select %p152, %s153, %s154
    %p158 = pneg %p152
    %p159 = scmp.eq.s32.totalorder %s12, 3
    %p160 = por %p158, %p159
    %p161 = scmp.ne.s32.totalorder %s153, %s156
    %p162 = scmp.eq.s32.totalorder %s12, 0
    %p163 = por %p161, %p162
    %p164 = scmp.ne.s32.totalorder %s153, %s156
    %p165 = scmp.eq.s32.totalorder %s17, 3
    %p166 = por %p164, %p165
    %p167 = scmp.ne.s32.totalorder %s156, %s157
    %p168 = scmp.eq.s32.totalorder %s17, 0
    %p169 = por %p167, %p168
    %p170 = scmp.ne.s32.totalorder %s156, %s157
    %p171 = scmp.eq.s32.totalorder %s18, 3
    %p172 = por %p170, %p171
    %p174 = scmp.ne.s32.totalorder %s157, %s173
    %p175 = scmp.eq.s32.totalorder %s18, 0
    %p176 = por %p174, %p175
    %p177 = scmp.le.s32.totalorder 1, %s12
    %p178 = scmp.lt.s32.totalorder %s12, 5
    %p179 = pnand %p177, %p178
    %p180 = pneg %p179
    // Predicated region
    $region9: #{tpu_custom_call.1} parent=5 // pred_check
      _
    $region10: #{tpu_custom_call.1} parent=5 // pred_check_branch
      %182 = sbr.rel (%p179) target = $region12
    $region11: #{tpu_custom_call.1} parent=5 // pred_region
      %s183 = ssub.s32 %s12, 1
      // Predicated region
      $region13: #{tpu_custom_call.1} parent=11 // pred_check
        %p184 = pneg %p59
      $region14: #{tpu_custom_call.1} parent=11 // pred_check_branch
        %186 = sbr.rel (%p184) target = $region16
      $region15: #{tpu_custom_call.1} parent=11 // pred_region
        _
      $region16: #{tpu_custom_call.1} parent=11 // pred_fallthru
        _
      // Predicated region
      $region17: #{tpu_custom_call.1} parent=11 // pred_check
        %p187 = pneg %p80
      $region18: #{tpu_custom_call.1} parent=11 // pred_check_branch
        %189 = sbr.rel (%p187) target = $region20
      $region19: #{tpu_custom_call.1} parent=11 // pred_region
        _
      $region20: #{tpu_custom_call.1} parent=11 // pred_fallthru
        _
      // Predicated region
      $region21: #{tpu_custom_call.1} parent=11 // pred_check
        %p190 = pneg %p101
      $region22: #{tpu_custom_call.1} parent=11 // pred_check_branch
        %192 = sbr.rel (%p190) target = $region24
      $region23: #{tpu_custom_call.1} parent=11 // pred_region
        _
      $region24: #{tpu_custom_call.1} parent=11 // pred_fallthru
        _
      // Predicated region
      $region25: #{tpu_custom_call.1} parent=11 // pred_check
        %p193 = pneg %p122
      $region26: #{tpu_custom_call.1} parent=11 // pred_check_branch
        %195 = sbr.rel (%p193) target = $region28
      $region27: #{tpu_custom_call.1} parent=11 // pred_region
        _
      $region28: #{tpu_custom_call.1} parent=11 // pred_fallthru
        _
      // Predicated region
      $region29: #{tpu_custom_call.1} parent=11 // pred_check
        %p196 = pneg %p143
      $region30: #{tpu_custom_call.1} parent=11 // pred_check_branch
        %198 = sbr.rel (%p196) target = $region32
      $region31: #{tpu_custom_call.1} parent=11 // pred_region
        _
      $region32: #{tpu_custom_call.1} parent=11 // pred_fallthru
        _
    $region12: #{tpu_custom_call.1} parent=5 // pred_fallthru
      _
    %p199 = scmp.lt.s32.totalorder %s12, 4
    // Predicated region
    $region33: #{tpu_custom_call.1} parent=5 // pred_check
      %p200 = pneg %p199
    $region34: #{tpu_custom_call.1} parent=5 // pred_check_branch
      %202 = sbr.rel (%p200) target = $region36
    $region35: #{tpu_custom_call.1} parent=5 // pred_region
      // Predicated region
      $region37: #{tpu_custom_call.1} parent=35 // pred_check
        %p203 = pneg %p32
      $region38: #{tpu_custom_call.1} parent=35 // pred_check_branch
        %205 = sbr.rel (%p203) target = $region40
      $region39: #{tpu_custom_call.1} parent=35 // pred_region
        %p206 = scmp.lt.s32.totalorder %s12, 3
        %s207 = scalar_select %p206, %s12, 3
        %s208 = smul.addr %s207, 2
        %s209 = smul.addr %s208, 8
        %s210 = scalar_lea.vmem %s0, %s209
      $region40: #{tpu_custom_call.1} parent=35 // pred_fallthru
        _
    $region36: #{tpu_custom_call.1} parent=5 // pred_fallthru
      _
    %p211 = scmp.le.s32.totalorder 1, %s12
    %p212 = scmp.lt.s32.totalorder %s12, 5
    %p213 = pnand %p211, %p212
    %p214 = pneg %p213
    // Predicated region
    $region41: #{tpu_custom_call.1} parent=5 // pred_check
      _
    $region42: #{tpu_custom_call.1} parent=5 // pred_check_branch
      %216 = sbr.rel (%p213) target = $region44
    $region43: #{tpu_custom_call.1} parent=5 // pred_region
      %s217 = ssub.s32 %s12, 1
      %p218 = scmp.lt.s32.totalorder %s17, 3
      %s219 = scalar_select %p218, %s17, 3
      %s220 = smul.addr %s219, 2
      %s221 = smul.addr %s220, 8
      %s222 = scalar_lea.vmem %s0, %s221
      %p223 = pneg %p38
      %p224 = pneg %p35
      %p225 = pneg %p59
      %p226 = pneg %p56
      %p227 = pneg %p80
      %p228 = pneg %p77
      %p229 = pneg %p101
      %p230 = pneg %p98
      %p231 = pneg %p122
      %p232 = pneg %p119
      %p233 = pneg %p143
      %p234 = pneg %p140
      %p235 = pneg %p169
      %p236 = pneg %p166
      %p237 = scmp.lt.s32.totalorder %s17, 3
      %s238 = scalar_select %p237, %s17, 3
      %s239 = smul.addr %s238, 2
      %s240 = smul.addr %s239, 8
      %s241 = scalar_lea.vmem %s6, %s240
      %p242 = scmp.lt.s32.totalorder %s17, 3
      %s243 = scalar_select %p242, %s17, 3
      %s244 = smul.addr %s243, 2
      %s245 = smul.addr %s244, 8
      %s246 = scalar_lea.vmem %s0, %s245
      %p247 = scmp.lt.s32.totalorder %s17, 3
      %s248 = scalar_select %p247, %s17, 3
      %s249 = smul.addr %s248, 2
      %s250 = smul.addr %s249, 8
      %s251 = scalar_lea.vmem %s6, %s250
      %v252 = vld [vmem:[%s246] sm:$0xff]
      %v253 = vld [vmem:[%s246 + $0x8] sm:$0xff]
      %v254 = vld [vmem:[%s1] sm:$0xff]
      %v255 = vld [vmem:[%s1 + $0x8] sm:$0xff]
      %v256 = vld [vmem:[%s2] sm:$0xff]
      %v257 = vld [vmem:[%s2 + $0x8] sm:$0xff]
      %v258 = vld [vmem:[%s2 + $0x10] sm:$0xff]
      %v259 = vld [vmem:[%s2 + $0x18] sm:$0xff]
      %v260 = vld [vmem:[%s2 + $0x20] sm:$0xff]
      %v261 = vld [vmem:[%s2 + $0x28] sm:$0xff]
      %v262 = vld [vmem:[%s2 + $0x30] sm:$0xff]
      %v263 = vld [vmem:[%s2 + $0x38] sm:$0xff]
      %v264 = vld [vmem:[%s2 + $0x40] sm:$0xff]
      %v265 = vld [vmem:[%s2 + $0x48] sm:$0xff]
      %v266 = vld [vmem:[%s2 + $0x50] sm:$0xff]
      %v267 = vld [vmem:[%s2 + $0x58] sm:$0xff]
      %v268 = vld [vmem:[%s2 + $0x60] sm:$0xff]
      %v269 = vld [vmem:[%s2 + $0x68] sm:$0xff]
      %v270 = vld [vmem:[%s2 + $0x70] sm:$0xff]
      %v271 = vld [vmem:[%s2 + $0x78] sm:$0xff]
      %v272 = vld [vmem:[%s2 + $0x80] sm:$0xff]
      %v273 = vld [vmem:[%s2 + $0x88] sm:$0xff]
      %v274 = vld [vmem:[%s2 + $0x90] sm:$0xff]
      %v275 = vld [vmem:[%s2 + $0x98] sm:$0xff]
      %v276 = vld [vmem:[%s2 + $0xa0] sm:$0xff]
      %v277 = vld [vmem:[%s2 + $0xa8] sm:$0xff]
      %v278 = vld [vmem:[%s2 + $0xb0] sm:$0xff]
      %v279 = vld [vmem:[%s2 + $0xb8] sm:$0xff]
      %v280 = vld [vmem:[%s2 + $0xc0] sm:$0xff]
      %v281 = vld [vmem:[%s2 + $0xc8] sm:$0xff]
      %v282 = vld [vmem:[%s2 + $0xd0] sm:$0xff]
      %v283 = vld [vmem:[%s2 + $0xd8] sm:$0xff]
      %v284 = vld [vmem:[%s2 + $0xe0] sm:$0xff]
      %v285 = vld [vmem:[%s2 + $0xe8] sm:$0xff]
      %v286 = vld [vmem:[%s2 + $0xf0] sm:$0xff]
      %v287 = vld [vmem:[%s2 + $0xf8] sm:$0xff]
      %v288 = vld [vmem:[%s3] sm:$0xff]
      %v289 = vld [vmem:[%s3 + $0x8] sm:$0xff]
      %v290 = vld [vmem:[%s3 + $0x10] sm:$0xff]
      %v291 = vld [vmem:[%s3 + $0x18] sm:$0xff]
      %v292 = vld [vmem:[%s3 + $0x20] sm:$0xff]
      %v293 = vld [vmem:[%s3 + $0x28] sm:$0xff]
      %v294 = vld [vmem:[%s3 + $0x30] sm:$0xff]
      %v295 = vld [vmem:[%s3 + $0x38] sm:$0xff]
      %v296 = vld [vmem:[%s3 + $0x40] sm:$0xff]
      %v297 = vld [vmem:[%s3 + $0x48] sm:$0xff]
      %v298 = vld [vmem:[%s3 + $0x50] sm:$0xff]
      %v299 = vld [vmem:[%s3 + $0x58] sm:$0xff]
      %v300 = vld [vmem:[%s3 + $0x60] sm:$0xff]
      %v301 = vld [vmem:[%s3 + $0x68] sm:$0xff]
      %v302 = vld [vmem:[%s3 + $0x70] sm:$0xff]
      %v303 = vld [vmem:[%s3 + $0x78] sm:$0xff]
      %v304 = vld [vmem:[%s3 + $0x80] sm:$0xff]
      %v305 = vld [vmem:[%s3 + $0x88] sm:$0xff]
      %v306 = vld [vmem:[%s3 + $0x90] sm:$0xff]
      %v307 = vld [vmem:[%s3 + $0x98] sm:$0xff]
      %v308 = vld [vmem:[%s3 + $0xa0] sm:$0xff]
      %v309 = vld [vmem:[%s3 + $0xa8] sm:$0xff]
      %v310 = vld [vmem:[%s3 + $0xb0] sm:$0xff]
      %v311 = vld [vmem:[%s3 + $0xb8] sm:$0xff]
      %v312 = vld [vmem:[%s3 + $0xc0] sm:$0xff]
      %v313 = vld [vmem:[%s3 + $0xc8] sm:$0xff]
      %v314 = vld [vmem:[%s3 + $0xd0] sm:$0xff]
      %v315 = vld [vmem:[%s3 + $0xd8] sm:$0xff]
      %v316 = vld [vmem:[%s3 + $0xe0] sm:$0xff]
      %v317 = vld [vmem:[%s3 + $0xe8] sm:$0xff]
      %v318 = vld [vmem:[%s3 + $0xf0] sm:$0xff]
      %v319 = vld [vmem:[%s3 + $0xf8] sm:$0xff]
      %v320 = vld [vmem:[%s3 + $0x100] sm:$0xff]
      %v321 = vld [vmem:[%s3 + $0x108] sm:$0xff]
      %v322 = vld [vmem:[%s3 + $0x110] sm:$0xff]
      %v323 = vld [vmem:[%s3 + $0x118] sm:$0xff]
      %v324 = vld [vmem:[%s4] sm:$0x1]
      %v325 = vld [vmem:[%s4 + $0x1] sm:$0x1]
      %v326 = vld [vmem:[%s4 + $0x2] sm:$0x1]
      %v327 = vld [vmem:[%s4 + $0x3] sm:$0x1]
      %v328 = vld [vmem:[%s5] sm:$0xff]
      %v329 = vld [vmem:[%s5 + $0x8] sm:$0xff]
      %v330 = vld [vmem:[%s5 + $0x10] sm:$0xff]
      %v331 = vld [vmem:[%s5 + $0x18] sm:$0xff]
      %332 = vmatprep.subr.mxu0 0.0
      %333 = vmatpush1.msra.mxu0 %v256
      %334 = vmatprep.subr.mxu0 0.0
      %335 = vmatpush1.msra.mxu0 %v257
      %336 = vmatprep.subr.mxu0 0.0
      %337 = vmatpush1.msra.mxu0 %v258
      %338 = vmatprep.subr.mxu0 0.0
      %339 = vmatpush1.msra.mxu0 %v259
      %340 = vmatprep.subr.mxu0 0.0
      %341 = vmatpush1.msra.mxu0 %v260
      %342 = vmatprep.subr.mxu0 0.0
      %343 = vmatpush1.msra.mxu0 %v261
      %344 = vmatprep.subr.mxu0 0.0
      %345 = vmatpush1.msra.mxu0 %v262
      %346 = vmatprep.subr.mxu0 0.0
      %347 = vmatpush1.msra.mxu0 %v263
      %348 = vmatprep.subr.mxu0 0.0
      %349 = vmatpush1.msra.mxu0 %v264
      %350 = vmatprep.subr.mxu0 0.0
      %351 = vmatpush1.msra.mxu0 %v265
      %352 = vmatprep.subr.mxu0 0.0
      %353 = vmatpush1.msra.mxu0 %v266
      %354 = vmatprep.subr.mxu0 0.0
      %355 = vmatpush1.msra.mxu0 %v267
      %356 = vmatprep.subr.mxu0 0.0
      %357 = vmatpush1.msra.mxu0 %v268
      %358 = vmatprep.subr.mxu0 0.0
      %359 = vmatpush1.msra.mxu0 %v269
      %360 = vmatprep.subr.mxu0 0.0
      %361 = vmatpush1.msra.mxu0 %v270
      %362 = vmatprep.subr.mxu0 0.0
      %363 = vmatpush1.msra.mxu0 %v271
      %364 = vmatprep.subr.mxu0 0.0
      %365 = vmatpush1.msra.mxu0 0.0
      %366 = vmatprep.subr.mxu0 0.0
      %367 = vmatpush1.msra.mxu0 0.0
      %368 = vmatprep.subr.mxu0 0.0
      %369 = vmatpush1.msra.mxu0 0.0
      %370 = vmatprep.subr.mxu0 0.0
      %371 = vmatpush1.msra.mxu0 0.0
      %372 = vmatprep.subr.mxu0 0.0
      %373 = vmatpush1.msra.mxu0 0.0
      %374 = vmatprep.subr.mxu0 0.0
      %375 = vmatpush1.msra.mxu0 0.0
      %376 = vmatprep.subr.mxu0 0.0
      %377 = vmatpush1.msra.mxu0 0.0
      %378 = vmatprep.subr.mxu0 0.0
      %379 = vmatpush1.msra.mxu0 0.0
      %380 = vmatprep.subr.mxu0 0.0
      %381 = vmatpush1.msra.mxu0 0.0
      %382 = vmatprep.subr.mxu0 0.0
      %383 = vmatpush1.msra.mxu0 0.0
      %384 = vmatprep.subr.mxu0 0.0
      %385 = vmatpush1.msra.mxu0 0.0
      %386 = vmatprep.subr.mxu0 0.0
      %387 = vmatpush1.msra.mxu0 0.0
      %388 = vmatprep.subr.mxu0 0.0
      %389 = vmatpush1.msra.mxu0 0.0
      %390 = vmatprep.subr.mxu0 0.0
      %391 = vmatpush1.msra.mxu0 0.0
      %392 = vmatprep.subr.mxu0 0.0
      %393 = vmatpush1.msra.mxu0 0.0
      %394 = vmatprep.subr.mxu0 0.0
      %395 = vmatpush1.msra.mxu0 0.0
      %396 = vmatprep.mubr.f32.mxu0 0.0
      %397 = vmatmul.mubr.f32.gmra.mrb[0].mxu0 %v252
      %v398 = vpop.f32.mrb[0].mxu0
      %v399 = vadd.f32 0.0, %v398
      %v400 = vpop.f32.mrb[0].mxu0
      %401 = vmatprep.mubr.f32.mxu0 0.0
      %402 = vmatmul.mubr.f32.gmra.mrb[0].mxu0 %v253
      %v403 = vpop.f32.mrb[0].mxu0
      %v404 = vadd.f32 0.0, %v403
      %v405 = vpop.f32.mrb[0].mxu0
      %406 = vdwg.mxu0
      %v407 = vlaneseq
      %v408 = vshrl.u32 %v407, 7
      %v409 = vsub.s32 0, %v408
      %v410 = vrot.slane %v324, %v409
      %vm411 = vcmask 130048
      %v413 = vsel %vm411, %v254, 0
      %v416 = vsel %vm411, %v255, 0
      %418 = vmatprep.subr.mxu0 0.0
      %419 = vmatpush1.msra.mxu0 %v399
      %420 = vmatprep.subr.mxu0 0.0
      %421 = vmatpush1.msra.mxu0 %v404
      %422 = vmatprep.subr.mxu0 0.0
      %423 = vmatpush1.msra.mxu0 0.0
      %424 = vmatprep.subr.mxu0 0.0
      %425 = vmatpush1.msra.mxu0 0.0
      %426 = vmatprep.subr.mxu0 0.0
      %427 = vmatpush1.msra.mxu0 0.0
      %428 = vmatprep.subr.mxu0 0.0
      %429 = vmatpush1.msra.mxu0 0.0
      %430 = vmatprep.subr.mxu0 0.0
      %431 = vmatpush1.msra.mxu0 0.0
      %432 = vmatprep.subr.mxu0 0.0
      %433 = vmatpush1.msra.mxu0 0.0
      %434 = vmatprep.subr.mxu0 0.0
      %435 = vmatpush1.msra.mxu0 0.0
      %436 = vmatprep.subr.mxu0 0.0
      %437 = vmatpush1.msra.mxu0 0.0
      %438 = vmatprep.subr.mxu0 0.0
      %439 = vmatpush1.msra.mxu0 0.0
      %440 = vmatprep.subr.mxu0 0.0
      %441 = vmatpush1.msra.mxu0 0.0
      %442 = vmatprep.subr.mxu0 0.0
      %443 = vmatpush1.msra.mxu0 0.0
      %444 = vmatprep.subr.mxu0 0.0
      %445 = vmatpush1.msra.mxu0 0.0
      %446 = vmatprep.subr.mxu0 0.0
      %447 = vmatpush1.msra.mxu0 0.0
      %448 = vmatprep.subr.mxu0 0.0
      %449 = vmatpush1.msra.mxu0 0.0
      %450 = vmatprep.subr.mxu0 0.0
      %451 = vmatpush1.msra.mxu0 0.0
      %452 = vmatprep.subr.mxu0 0.0
      %453 = vmatpush1.msra.mxu0 0.0
      %454 = vmatprep.subr.mxu0 0.0
      %455 = vmatpush1.msra.mxu0 0.0
      %456 = vmatprep.subr.mxu0 0.0
      %457 = vmatpush1.msra.mxu0 0.0
      %458 = vmatprep.subr.mxu0 0.0
      %459 = vmatpush1.msra.mxu0 0.0
      %460 = vmatprep.subr.mxu0 0.0
      %461 = vmatpush1.msra.mxu0 0.0
      %462 = vmatprep.subr.mxu0 0.0
      %463 = vmatpush1.msra.mxu0 0.0
      %464 = vmatprep.subr.mxu0 0.0
      %465 = vmatpush1.msra.mxu0 0.0
      %466 = vmatprep.subr.mxu0 0.0
      %467 = vmatpush1.msra.mxu0 0.0
      %468 = vmatprep.subr.mxu0 0.0
      %469 = vmatpush1.msra.mxu0 0.0
      %470 = vmatprep.subr.mxu0 0.0
      %471 = vmatpush1.msra.mxu0 0.0
      %472 = vmatprep.subr.mxu0 0.0
      %473 = vmatpush1.msra.mxu0 0.0
      %474 = vmatprep.subr.mxu0 0.0
      %475 = vmatpush1.msra.mxu0 0.0
      %476 = vmatprep.subr.mxu0 0.0
      %477 = vmatpush1.msra.mxu0 0.0
      %478 = vmatprep.subr.mxu0 0.0
      %479 = vmatpush1.msra.mxu0 0.0
      %480 = vmatprep.subr.mxu0 0.0
      %481 = vmatpush1.msra.mxu0 0.0
      %482 = vmatprep.mubr.f32.mxu0 0.0
      %483 = vmatmul.mubr.f32.gmra.mrb[0].mxu0 %v413
      %v484 = vpop.f32.mrb[0].mxu0
      %v485 = vadd.f32 %v410, %v484
      %v486 = vpop.f32.mrb[0].mxu0
      %487 = vmatprep.mubr.f32.mxu0 0.0
      %488 = vmatmul.mubr.f32.gmra.mrb[0].mxu0 %v416
      %v489 = vpop.f32.mrb[0].mxu0
      %v490 = vadd.f32 %v410, %v489
      %v491 = vpop.f32.mrb[0].mxu0
      %492 = vdwg.mxu0
      %v493 = vmax.f32 %v485, 0.0
      %v494 = vmax.f32 %v490, 0.0
      %495 = vmatprep.subr.mxu0 0.0
      %496 = vmatpush1.msra.mxu0 %v272
      %497 = vmatprep.subr.mxu0 0.0
      %498 = vmatpush1.msra.mxu0 %v273
      %499 = vmatprep.subr.mxu0 0.0
      %500 = vmatpush1.msra.mxu0 %v274
      %501 = vmatprep.subr.mxu0 0.0
      %502 = vmatpush1.msra.mxu0 %v275
      %503 = vmatprep.subr.mxu0 0.0
      %504 = vmatpush1.msra.mxu0 %v276
      %505 = vmatprep.subr.mxu0 0.0
      %506 = vmatpush1.msra.mxu0 %v277
      %507 = vmatprep.subr.mxu0 0.0
      %508 = vmatpush1.msra.mxu0 %v278
      %509 = vmatprep.subr.mxu0 0.0
      %510 = vmatpush1.msra.mxu0 %v279
      %511 = vmatprep.subr.mxu0 0.0
      %512 = vmatpush1.msra.mxu0 %v280
      %513 = vmatprep.subr.mxu0 0.0
      %514 = vmatpush1.msra.mxu0 %v281
      %515 = vmatprep.subr.mxu0 0.0
      %516 = vmatpush1.msra.mxu0 %v282
      %517 = vmatprep.subr.mxu0 0.0
      %518 = vmatpush1.msra.mxu0 %v283
      %519 = vmatprep.subr.mxu0 0.0
      %520 = vmatpush1.msra.mxu0 %v284
      %521 = vmatprep.subr.mxu0 0.0
      %522 = vmatpush1.msra.mxu0 %v285
      %523 = vmatprep.subr.mxu0 0.0
      %524 = vmatpush1.msra.mxu0 %v286
      %525 = vmatprep.subr.mxu0 0.0
      %526 = vmatpush1.msra.mxu0 %v287
      %527 = vmatprep.subr.mxu0 0.0
      %528 = vmatpush1.msra.mxu0 0.0
      %529 = vmatprep.subr.mxu0 0.0
      %530 = vmatpush1.msra.mxu0 0.0
      %531 = vmatprep.subr.mxu0 0.0
      %532 = vmatpush1.msra.mxu0 0.0
      %533 = vmatprep.subr.mxu0 0.0
      %534 = vmatpush1.msra.mxu0 0.0
      %535 = vmatprep.subr.mxu0 0.0
      %536 = vmatpush1.msra.mxu0 0.0
      %537 = vmatprep.subr.mxu0 0.0
      %538 = vmatpush1.msra.mxu0 0.0
      %539 = vmatprep.subr.mxu0 0.0
      %540 = vmatpush1.msra.mxu0 0.0
      %541 = vmatprep.subr.mxu0 0.0
      %542 = vmatpush1.msra.mxu0 0.0
      %543 = vmatprep.subr.mxu0 0.0
      %544 = vmatpush1.msra.mxu0 0.0
      %545 = vmatprep.subr.mxu0 0.0
      %546 = vmatpush1.msra.mxu0 0.0
      %547 = vmatprep.subr.mxu0 0.0
      %548 = vmatpush1.msra.mxu0 0.0
      %549 = vmatprep.subr.mxu0 0.0
      %550 = vmatpush1.msra.mxu0 0.0
      %551 = vmatprep.subr.mxu0 0.0
      %552 = vmatpush1.msra.mxu0 0.0
      %553 = vmatprep.subr.mxu0 0.0
      %554 = vmatpush1.msra.mxu0 0.0
      %555 = vmatprep.subr.mxu0 0.0
      %556 = vmatpush1.msra.mxu0 0.0
      %557 = vmatprep.subr.mxu0 0.0
      %558 = vmatpush1.msra.mxu0 0.0
      %559 = vmatprep.mubr.f32.mxu0 0.0
      %560 = vmatmul.mubr.f32.gmra.mrb[0].mxu0 %v493
      %v561 = vpop.f32.mrb[0].mxu0
      %v562 = vadd.f32 0.0, %v561
      %v563 = vpop.f32.mrb[0].mxu0
      %564 = vmatprep.mubr.f32.mxu0 0.0
      %565 = vmatmul.mubr.f32.gmra.mrb[0].mxu0 %v494
      %v566 = vpop.f32.mrb[0].mxu0
      %v567 = vadd.f32 0.0, %v566
      %v568 = vpop.f32.mrb[0].mxu0
      %569 = vdwg.mxu0
      %v570 = vlaneseq
      %v571 = vshrl.u32 %v570, 7
      %v572 = vsub.s32 0, %v571
      %v573 = vrot.slane %v325, %v572
      %574 = vmatprep.subr.mxu0 0.0
      %575 = vmatpush1.msra.mxu0 %v562
      %576 = vmatprep.subr.mxu0 0.0
      %577 = vmatpush1.msra.mxu0 %v567
      %578 = vmatprep.subr.mxu0 0.0
      %579 = vmatpush1.msra.mxu0 0.0
      %580 = vmatprep.subr.mxu0 0.0
      %581 = vmatpush1.msra.mxu0 0.0
      %582 = vmatprep.subr.mxu0 0.0
      %583 = vmatpush1.msra.mxu0 0.0
      %584 = vmatprep.subr.mxu0 0.0
      %585 = vmatpush1.msra.mxu0 0.0
      %586 = vmatprep.subr.mxu0 0.0
      %587 = vmatpush1.msra.mxu0 0.0
      %588 = vmatprep.subr.mxu0 0.0
      %589 = vmatpush1.msra.mxu0 0.0
      %590 = vmatprep.subr.mxu0 0.0
      %591 = vmatpush1.msra.mxu0 0.0
      %592 = vmatprep.subr.mxu0 0.0
      %593 = vmatpush1.msra.mxu0 0.0
      %594 = vmatprep.subr.mxu0 0.0
      %595 = vmatpush1.msra.mxu0 0.0
      %596 = vmatprep.subr.mxu0 0.0
      %597 = vmatpush1.msra.mxu0 0.0
      %598 = vmatprep.subr.mxu0 0.0
      %599 = vmatpush1.msra.mxu0 0.0
      %600 = vmatprep.subr.mxu0 0.0
      %601 = vmatpush1.msra.mxu0 0.0
      %602 = vmatprep.subr.mxu0 0.0
      %603 = vmatpush1.msra.mxu0 0.0
      %604 = vmatprep.subr.mxu0 0.0
      %605 = vmatpush1.msra.mxu0 0.0
      %606 = vmatprep.subr.mxu0 0.0
      %607 = vmatpush1.msra.mxu0 0.0
      %608 = vmatprep.subr.mxu0 0.0
      %609 = vmatpush1.msra.mxu0 0.0
      %610 = vmatprep.subr.mxu0 0.0
      %611 = vmatpush1.msra.mxu0 0.0
      %612 = vmatprep.subr.mxu0 0.0
      %613 = vmatpush1.msra.mxu0 0.0
      %614 = vmatprep.subr.mxu0 0.0
      %615 = vmatpush1.msra.mxu0 0.0
      %616 = vmatprep.subr.mxu0 0.0
      %617 = vmatpush1.msra.mxu0 0.0
      %618 = vmatprep.subr.mxu0 0.0
      %619 = vmatpush1.msra.mxu0 0.0
      %620 = vmatprep.subr.mxu0 0.0
      %621 = vmatpush1.msra.mxu0 0.0
      %622 = vmatprep.subr.mxu0 0.0
      %623 = vmatpush1.msra.mxu0 0.0
      %624 = vmatprep.subr.mxu0 0.0
      %625 = vmatpush1.msra.mxu0 0.0
      %626 = vmatprep.subr.mxu0 0.0
      %627 = vmatpush1.msra.mxu0 0.0
      %628 = vmatprep.subr.mxu0 0.0
      %629 = vmatpush1.msra.mxu0 0.0
      %630 = vmatprep.subr.mxu0 0.0
      %631 = vmatpush1.msra.mxu0 0.0
      %632 = vmatprep.subr.mxu0 0.0
      %633 = vmatpush1.msra.mxu0 0.0
      %634 = vmatprep.subr.mxu0 0.0
      %635 = vmatpush1.msra.mxu0 0.0
      %636 = vmatprep.subr.mxu0 0.0
      %637 = vmatpush1.msra.mxu0 0.0
      %638 = vmatprep.mubr.f32.mxu0 0.0
      %639 = vmatmul.mubr.f32.gmra.mrb[0].mxu0 %v413
      %v640 = vpop.f32.mrb[0].mxu0
      %v641 = vadd.f32 %v573, %v640
      %v642 = vpop.f32.mrb[0].mxu0
      %643 = vmatprep.mubr.f32.mxu0 0.0
      %644 = vmatmul.mubr.f32.gmra.mrb[0].mxu0 %v416
      %v645 = vpop.f32.mrb[0].mxu0
      %v646 = vadd.f32 %v573, %v645
      %v647 = vpop.f32.mrb[0].mxu0
      %648 = vdwg.mxu0
      %v649 = vmax.f32 %v641, 0.0
      %v650 = vmax.f32 %v646, 0.0
      %v652 = vsel %vm411, 1.0, 0
      %654 = vmatprep.subr.mxu0 0.0
      %655 = vmatpush1.msra.mxu0 %v493
      %656 = vmatprep.subr.mxu0 0.0
      %657 = vmatpush1.msra.mxu0 %v494
      %658 = vmatprep.subr.mxu0 0.0
      %659 = vmatpush1.msra.mxu0 0.0
      %660 = vmatprep.subr.mxu0 0.0
      %661 = vmatpush1.msra.mxu0 0.0
      %662 = vmatprep.subr.mxu0 0.0
      %663 = vmatpush1.msra.mxu0 0.0
      %664 = vmatprep.subr.mxu0 0.0
      %665 = vmatpush1.msra.mxu0 0.0
      %666 = vmatprep.subr.mxu0 0.0
      %667 = vmatpush1.msra.mxu0 0.0
      %668 = vmatprep.subr.mxu0 0.0
      %669 = vmatpush1.msra.mxu0 0.0
      %670 = vmatprep.subr.mxu0 0.0
      %671 = vmatpush1.msra.mxu0 0.0
      %672 = vmatprep.subr.mxu0 0.0
      %673 = vmatpush1.msra.mxu0 0.0
      %674 = vmatprep.subr.mxu0 0.0
      %675 = vmatpush1.msra.mxu0 0.0
      %676 = vmatprep.subr.mxu0 0.0
      %677 = vmatpush1.msra.mxu0 0.0
      %678 = vmatprep.subr.mxu0 0.0
      %679 = vmatpush1.msra.mxu0 0.0
      %680 = vmatprep.subr.mxu0 0.0
      %681 = vmatpush1.msra.mxu0 0.0
      %682 = vmatprep.subr.mxu0 0.0
      %683 = vmatpush1.msra.mxu0 0.0
      %684 = vmatprep.subr.mxu0 0.0
      %685 = vmatpush1.msra.mxu0 0.0
      %686 = vmatprep.subr.mxu0 0.0
      %687 = vmatpush1.msra.mxu0 0.0
      %688 = vmatprep.subr.mxu0 0.0
      %689 = vmatpush1.msra.mxu0 0.0
      %690 = vmatprep.subr.mxu0 0.0
      %691 = vmatpush1.msra.mxu0 0.0
      %692 = vmatprep.subr.mxu0 0.0
      %693 = vmatpush1.msra.mxu0 0.0
      %694 = vmatprep.subr.mxu0 0.0
      %695 = vmatpush1.msra.mxu0 0.0
      %696 = vmatprep.subr.mxu0 0.0
      %697 = vmatpush1.msra.mxu0 0.0
      %698 = vmatprep.subr.mxu0 0.0
      %699 = vmatpush1.msra.mxu0 0.0
      %700 = vmatprep.subr.mxu0 0.0
      %701 = vmatpush1.msra.mxu0 0.0
      %702 = vmatprep.subr.mxu0 0.0
      %703 = vmatpush1.msra.mxu0 0.0
      %704 = vmatprep.subr.mxu0 0.0
      %705 = vmatpush1.msra.mxu0 0.0
      %706 = vmatprep.subr.mxu0 0.0
      %707 = vmatpush1.msra.mxu0 0.0
      %708 = vmatprep.subr.mxu0 0.0
      %709 = vmatpush1.msra.mxu0 0.0
      %710 = vmatprep.subr.mxu0 0.0
      %711 = vmatpush1.msra.mxu0 0.0
      %712 = vmatprep.subr.mxu0 0.0
      %713 = vmatpush1.msra.mxu0 0.0
      %714 = vmatprep.subr.mxu0 0.0
      %715 = vmatpush1.msra.mxu0 0.0
      %716 = vmatprep.subr.mxu0 0.0
      %717 = vmatpush1.msra.mxu0 0.0
      %718 = vmatprep.mubr.f32.mxu0 0.0
      %719 = vmatmul.mubr.f32.gmra.mrb[0].mxu0 %v652
      %v720 = vpop.f32.mrb[0].mxu0
      %v721 = vadd.f32 0.0, %v720
      %v722 = vpop.f32.mrb[0].mxu0
      %723 = vdwg.mxu0
      %v724 = vmul.f32 %v721, 0.0625
      %725 = vmatprep.subr.mxu0 0.0
      %726 = vmatpush1.msra.mxu0 %v649
      %727 = vmatprep.subr.mxu0 0.0
      %728 = vmatpush1.msra.mxu0 %v650
      %729 = vmatprep.subr.mxu0 0.0
      %730 = vmatpush1.msra.mxu0 0.0
      %731 = vmatprep.subr.mxu0 0.0
      %732 = vmatpush1.msra.mxu0 0.0
      %733 = vmatprep.subr.mxu0 0.0
      %734 = vmatpush1.msra.mxu0 0.0
      %735 = vmatprep.subr.mxu0 0.0
      %736 = vmatpush1.msra.mxu0 0.0
      %737 = vmatprep.subr.mxu0 0.0
      %738 = vmatpush1.msra.mxu0 0.0
      %739 = vmatprep.subr.mxu0 0.0
      %740 = vmatpush1.msra.mxu0 0.0
      %741 = vmatprep.subr.mxu0 0.0
      %742 = vmatpush1.msra.mxu0 0.0
      %743 = vmatprep.subr.mxu0 0.0
      %744 = vmatpush1.msra.mxu0 0.0
      %745 = vmatprep.subr.mxu0 0.0
      %746 = vmatpush1.msra.mxu0 0.0
      %747 = vmatprep.subr.mxu0 0.0
      %748 = vmatpush1.msra.mxu0 0.0
      %749 = vmatprep.subr.mxu0 0.0
      %750 = vmatpush1.msra.mxu0 0.0
      %751 = vmatprep.subr.mxu0 0.0
      %752 = vmatpush1.msra.mxu0 0.0
      %753 = vmatprep.subr.mxu0 0.0
      %754 = vmatpush1.msra.mxu0 0.0
      %755 = vmatprep.subr.mxu0 0.0
      %756 = vmatpush1.msra.mxu0 0.0
      %757 = vmatprep.subr.mxu0 0.0
      %758 = vmatpush1.msra.mxu0 0.0
      %759 = vmatprep.subr.mxu0 0.0
      %760 = vmatpush1.msra.mxu0 0.0
      %761 = vmatprep.subr.mxu0 0.0
      %762 = vmatpush1.msra.mxu0 0.0
      %763 = vmatprep.subr.mxu0 0.0
      %764 = vmatpush1.msra.mxu0 0.0
      %765 = vmatprep.subr.mxu0 0.0
      %766 = vmatpush1.msra.mxu0 0.0
      %767 = vmatprep.subr.mxu0 0.0
      %768 = vmatpush1.msra.mxu0 0.0
      %769 = vmatprep.subr.mxu0 0.0
      %770 = vmatpush1.msra.mxu0 0.0
      %771 = vmatprep.subr.mxu0 0.0
      %772 = vmatpush1.msra.mxu0 0.0
      %773 = vmatprep.subr.mxu0 0.0
      %774 = vmatpush1.msra.mxu0 0.0
      %775 = vmatprep.subr.mxu0 0.0
      %776 = vmatpush1.msra.mxu0 0.0
      %777 = vmatprep.subr.mxu0 0.0
      %778 = vmatpush1.msra.mxu0 0.0
      %779 = vmatprep.subr.mxu0 0.0
      %780 = vmatpush1.msra.mxu0 0.0
      %781 = vmatprep.subr.mxu0 0.0
      %782 = vmatpush1.msra.mxu0 0.0
      %783 = vmatprep.subr.mxu0 0.0
      %784 = vmatpush1.msra.mxu0 0.0
      %785 = vmatprep.subr.mxu0 0.0
      %786 = vmatpush1.msra.mxu0 0.0
      %787 = vmatprep.subr.mxu0 0.0
      %788 = vmatpush1.msra.mxu0 0.0
      %789 = vmatprep.mubr.f32.mxu0 0.0
      %790 = vmatmul.mubr.f32.gmra.mrb[0].mxu0 %v652
      %v791 = vpop.f32.mrb[0].mxu0
      %v792 = vadd.f32 0.0, %v791
      %v793 = vpop.f32.mrb[0].mxu0
      %794 = vdwg.mxu0
      %v795 = vmul.f32 %v792, 0.0625
      %v796 = vlaneseq
      %v797 = vshrl.u32 %v796, 7
      %v798 = vsub.s32 0, %v797
      %v799 = vrot.slane %v724, %v798
      %v800 = vlaneseq
      %v801 = vshrl.u32 %v800, 7
      %v802 = vsub.s32 0, %v801
      %v803 = vrot.slane %v795, %v802
      %v804 = vmul.f32 %v799, %v328
      %v805 = vmul.f32 %v803, %v329
      %v806 = vmul.f32 %v799, %v330
      %v807 = vmul.f32 %v803, %v331
      %v808 = vlaneseq
      %v809 = vshrl.u32 %v808, 7
      %v810 = vsub.s32 0, %v809
      %v811 = vrot.slane %v326, %v810
      %812 = vmatprep.subr.mxu0 0.0
      %813 = vmatpush1.msra.mxu0 %v288
      %814 = vmatprep.subr.mxu0 0.0
      %815 = vmatpush1.msra.mxu0 %v289
      %816 = vmatprep.subr.mxu0 0.0
      %817 = vmatpush1.msra.mxu0 %v290
      %818 = vmatprep.subr.mxu0 0.0
      %819 = vmatpush1.msra.mxu0 %v291
      %820 = vmatprep.subr.mxu0 0.0
      %821 = vmatpush1.msra.mxu0 %v292
      %822 = vmatprep.subr.mxu0 0.0
      %823 = vmatpush1.msra.mxu0 %v293
      %824 = vmatprep.subr.mxu0 0.0
      %825 = vmatpush1.msra.mxu0 %v294
      %826 = vmatprep.subr.mxu0 0.0
      %827 = vmatpush1.msra.mxu0 %v295
      %828 = vmatprep.subr.mxu0 0.0
      %829 = vmatpush1.msra.mxu0 %v296
      %830 = vmatprep.subr.mxu0 0.0
      %831 = vmatpush1.msra.mxu0 %v297
      %832 = vmatprep.subr.mxu0 0.0
      %833 = vmatpush1.msra.mxu0 %v298
      %834 = vmatprep.subr.mxu0 0.0
      %835 = vmatpush1.msra.mxu0 %v299
      %836 = vmatprep.subr.mxu0 0.0
      %837 = vmatpush1.msra.mxu0 %v300
      %838 = vmatprep.subr.mxu0 0.0
      %839 = vmatpush1.msra.mxu0 %v301
      %840 = vmatprep.subr.mxu0 0.0
      %841 = vmatpush1.msra.mxu0 %v302
      %842 = vmatprep.subr.mxu0 0.0
      %843 = vmatpush1.msra.mxu0 %v303
      %844 = vmatprep.subr.mxu0 0.0
      %845 = vmatpush1.msra.mxu0 %v304
      %846 = vmatprep.subr.mxu0 0.0
      %847 = vmatpush1.msra.mxu0 %v305
      %848 = vmatprep.subr.mxu0 0.0
      %849 = vmatpush1.msra.mxu0 %v306
      %850 = vmatprep.subr.mxu0 0.0
      %851 = vmatpush1.msra.mxu0 %v307
      %852 = vmatprep.subr.mxu0 0.0
      %853 = vmatpush1.msra.mxu0 %v308
      %854 = vmatprep.subr.mxu0 0.0
      %855 = vmatpush1.msra.mxu0 %v309
      %856 = vmatprep.subr.mxu0 0.0
      %857 = vmatpush1.msra.mxu0 %v310
      %858 = vmatprep.subr.mxu0 0.0
      %859 = vmatpush1.msra.mxu0 %v311
      %860 = vmatprep.subr.mxu0 0.0
      %861 = vmatpush1.msra.mxu0 %v312
      %862 = vmatprep.subr.mxu0 0.0
      %863 = vmatpush1.msra.mxu0 %v313
      %864 = vmatprep.subr.mxu0 0.0
      %865 = vmatpush1.msra.mxu0 %v314
      %866 = vmatprep.subr.mxu0 0.0
      %867 = vmatpush1.msra.mxu0 %v315
      %868 = vmatprep.subr.mxu0 0.0
      %869 = vmatpush1.msra.mxu0 %v316
      %870 = vmatprep.subr.mxu0 0.0
      %871 = vmatpush1.msra.mxu0 %v317
      %872 = vmatprep.subr.mxu0 0.0
      %873 = vmatpush1.msra.mxu0 %v318
      %874 = vmatprep.subr.mxu0 0.0
      %875 = vmatpush1.msra.mxu0 %v319
      %876 = vmatprep.mubr.f32.mxu0 %v805
      %877 = vmatmul.mubr.f32.gmra.mrb[0].mxu0 %v804
      %v878 = vpop.f32.mrb[0].mxu0
      %v879 = vadd.f32 %v811, %v878
      %v880 = vpop.f32.mrb[0].mxu0
      %881 = vmatprep.mubr.f32.mxu0 %v807
      %882 = vmatmul.mubr.f32.gmra.mrb[0].mxu0 %v806
      %v883 = vpop.f32.mrb[0].mxu0
      %v884 = vadd.f32 %v811, %v883
      %v885 = vpop.f32.mrb[0].mxu0
      %886 = vdwg.mxu0
      %v887 = vmax.f32 %v879, 0.0
      %v888 = vmax.f32 %v884, 0.0
      %v889 = vlaneseq
      %v890 = vshrl.u32 %v889, 7
      %v891 = vsub.s32 0, %v890
      %v892 = vrot.slane %v327, %v891
      %vm893 = vcmask 261120
      %v895 = vsel %vm893, %v887, 0
      %v898 = vsel %vm893, %v888, 0
      %900 = vmatprep.subr.mxu0 0.0
      %901 = vmatpush1.msra.mxu0 %v320
      %902 = vmatprep.subr.mxu0 0.0
      %903 = vmatpush1.msra.mxu0 %v321
      %904 = vmatprep.subr.mxu0 0.0
      %905 = vmatpush1.msra.mxu0 %v322
      %906 = vmatprep.subr.mxu0 0.0
      %907 = vmatpush1.msra.mxu0 %v323
      %908 = vmatprep.subr.mxu0 0.0
      %909 = vmatpush1.msra.mxu0 0.0
      %910 = vmatprep.subr.mxu0 0.0
      %911 = vmatpush1.msra.mxu0 0.0
      %912 = vmatprep.subr.mxu0 0.0
      %913 = vmatpush1.msra.mxu0 0.0
      %914 = vmatprep.subr.mxu0 0.0
      %915 = vmatpush1.msra.mxu0 0.0
      %916 = vmatprep.subr.mxu0 0.0
      %917 = vmatpush1.msra.mxu0 0.0
      %918 = vmatprep.subr.mxu0 0.0
      %919 = vmatpush1.msra.mxu0 0.0
      %920 = vmatprep.subr.mxu0 0.0
      %921 = vmatpush1.msra.mxu0 0.0
      %922 = vmatprep.subr.mxu0 0.0
      %923 = vmatpush1.msra.mxu0 0.0
      %924 = vmatprep.subr.mxu0 0.0
      %925 = vmatpush1.msra.mxu0 0.0
      %926 = vmatprep.subr.mxu0 0.0
      %927 = vmatpush1.msra.mxu0 0.0
      %928 = vmatprep.subr.mxu0 0.0
      %929 = vmatpush1.msra.mxu0 0.0
      %930 = vmatprep.subr.mxu0 0.0
      %931 = vmatpush1.msra.mxu0 0.0
      %932 = vmatprep.subr.mxu0 0.0
      %933 = vmatpush1.msra.mxu0 0.0
      %934 = vmatprep.subr.mxu0 0.0
      %935 = vmatpush1.msra.mxu0 0.0
      %936 = vmatprep.subr.mxu0 0.0
      %937 = vmatpush1.msra.mxu0 0.0
      %938 = vmatprep.subr.mxu0 0.0
      %939 = vmatpush1.msra.mxu0 0.0
      %940 = vmatprep.subr.mxu0 0.0
      %941 = vmatpush1.msra.mxu0 0.0
      %942 = vmatprep.subr.mxu0 0.0
      %943 = vmatpush1.msra.mxu0 0.0
      %944 = vmatprep.subr.mxu0 0.0
      %945 = vmatpush1.msra.mxu0 0.0
      %946 = vmatprep.subr.mxu0 0.0
      %947 = vmatpush1.msra.mxu0 0.0
      %948 = vmatprep.subr.mxu0 0.0
      %949 = vmatpush1.msra.mxu0 0.0
      %950 = vmatprep.subr.mxu0 0.0
      %951 = vmatpush1.msra.mxu0 0.0
      %952 = vmatprep.subr.mxu0 0.0
      %953 = vmatpush1.msra.mxu0 0.0
      %954 = vmatprep.subr.mxu0 0.0
      %955 = vmatpush1.msra.mxu0 0.0
      %956 = vmatprep.subr.mxu0 0.0
      %957 = vmatpush1.msra.mxu0 0.0
      %958 = vmatprep.subr.mxu0 0.0
      %959 = vmatpush1.msra.mxu0 0.0
      %960 = vmatprep.subr.mxu0 0.0
      %961 = vmatpush1.msra.mxu0 0.0
      %962 = vmatprep.subr.mxu0 0.0
      %963 = vmatpush1.msra.mxu0 0.0
      %964 = vmatprep.mubr.f32.mxu0 0.0
      %965 = vmatmul.mubr.f32.gmra.mrb[0].mxu0 %v895
      %v966 = vpop.f32.mrb[0].mxu0
      %v967 = vadd.f32 %v892, %v966
      %v968 = vpop.f32.mrb[0].mxu0
      %969 = vmatprep.mubr.f32.mxu0 0.0
      %970 = vmatmul.mubr.f32.gmra.mrb[0].mxu0 %v898
      %v971 = vpop.f32.mrb[0].mxu0
      %v972 = vadd.f32 %v892, %v971
      %v973 = vpop.f32.mrb[0].mxu0
      %974 = vdwg.mxu0
      %vm975 = vcmask 23552
      %v976 = vsel %vm975, %v967, -inf
      %977 = vmax.xlane.f32.xlu0 %v976
      %v978 = vpop.xlane.xlu0 %977
      %v979 = vsel %vm975, %v972, -inf
      %980 = vmax.xlane.f32.xlu0 %v979
      %v981 = vpop.xlane.xlu0 %980
      %v982 = vsub.f32 %v967, %v978
      %v983 = vsub.f32 %v972, %v981
      %v984 = vmul.f32 %v982, 1.442695
      %v985 = vpow.pop %v984
      %v986 = vmul.f32 %v983, 1.442695
      %v987 = vpow.pop %v986
      %v988 = vsel %vm975, %v985, 0.0
      %989 = vadd.xlane.f32.xlu0 %v988
      %v990 = vpop.xlane.xlu0 %989
      %v991 = vsel %vm975, %v987, 0.0
      %992 = vadd.xlane.f32.xlu0 %v991
      %v993 = vpop.xlane.xlu0 %992
      %v994 = vlog2.pop %v990
      %v995 = vmul.f32 %v994, 0.6931472
      %v996 = vlog2.pop %v993
      %v997 = vmul.f32 %v996, 0.6931472
      %v998 = vadd.f32 %v995, %v978
      %v999 = vadd.f32 %v997, %v981
      %v1000 = vsub.f32 %v967, %v998
      %v1001 = vsub.f32 %v972, %v999
      %1002 = vst.msk [vmem:[%s251] sm:$0xff] %vm975, %v1000
      %1003 = vst.msk [vmem:[%s251 + $0x8] sm:$0xff] %vm975, %v1001
      %p1004 = scmp.lt.s32.totalorder %s17, 3
      %s1005 = scalar_select %p1004, %s17, 3
      %s1006 = smul.addr %s1005, 2
      %s1007 = smul.addr %s1006, 8
      %s1008 = scalar_lea.vmem %s6, %s1007
      // Predicated region
      $region45: #{tpu_custom_call.1} parent=43 // pred_check
        %p1009 = pneg %p166
      $region46: #{tpu_custom_call.1} parent=43 // pred_check_branch
        %1011 = sbr.rel (%p1009) target = $region48
      $region47: #{tpu_custom_call.1} parent=43 // pred_region
        _
      $region48: #{tpu_custom_call.1} parent=43 // pred_fallthru
        _
    $region44: #{tpu_custom_call.1} parent=5 // pred_fallthru
      _
    %p1012 = scmp.le.s32.totalorder 2, %s12
    // Predicated region
    $region49: #{tpu_custom_call.1} parent=5 // pred_check
      %p1013 = pneg %p1012
    $region50: #{tpu_custom_call.1} parent=5 // pred_check_branch
      %1015 = sbr.rel (%p1013) target = $region52
    $region51: #{tpu_custom_call.1} parent=5 // pred_region
      %s1016 = ssub.s32 %s12, 2
      // Predicated region
      $region53: #{tpu_custom_call.1} parent=51 // pred_check
        %p1017 = pneg %p172
      $region54: #{tpu_custom_call.1} parent=51 // pred_check_branch
        %1019 = sbr.rel (%p1017) target = $region56
      $region55: #{tpu_custom_call.1} parent=51 // pred_region
        %p1020 = scmp.lt.s32.totalorder %s18, 3
        %s1021 = scalar_select %p1020, %s18, 3
        %s1022 = smul.addr %s1021, 2
        %s1023 = smul.addr %s1022, 8
        %s1024 = scalar_lea.vmem %s6, %s1023
      $region56: #{tpu_custom_call.1} parent=51 // pred_fallthru
        _
    $region52: #{tpu_custom_call.1} parent=5 // pred_fallthru
      _
  $region6: #{tpu_custom_call.1} parent=0 // loop_footer
    %s16 = sadd.s32 1, %s12
  $region7: #{tpu_custom_call.1} parent=0 // loop_footer_branch
    %11 = sbr.rel target = $region3
  $region8: #{tpu_custom_call.1} parent=0 // loop_exit
    _

// kernel: tpu_custom_call.1
$region0: #{tpu_custom_call.1}
  #allocation0 [shape = 'u32[]', space=smem, size = 0x4, offset = 0x4, fixed_abs, tag = 'smem constant byte address 0x4 - core index']
  #allocation1 [shape = 'u32[144,128]{1,0:T(1,128)}', space=vmem, size = 0x12000, scoped, tag = 'internal scratch']
  %s0 = inlined_call_operand.vmem [shape: f32[4,16,128], index: 0, kind: input, shape index: {}]
  %s1 = inlined_call_operand.vmem [shape: f32[16,16], index: 1, kind: input, shape index: {}]
  %s2 = inlined_call_operand.vmem [shape: f32[256,128], index: 2, kind: input, shape index: {}]
  %s3 = inlined_call_operand.vmem [shape: f32[288,32], index: 3, kind: input, shape index: {}]
  %s4 = inlined_call_operand.vmem [shape: f32[4,128], index: 4, kind: input, shape index: {}]
  %s5 = inlined_call_operand.vmem [shape: f32[16,256], index: 5, kind: input, shape index: {}]
  %s6 = inlined_call_operand.vmem [shape: f32[4,16,3], index: 6, kind: output, shape index: {}]
  %s7 = sld [smem:[#allocation0]]
  $region57: #{tpu_custom_call.1} parent=0
    _
  %s9 = ssub.s32 1, %s7
  %s10 = scalar_select 0, %s9, %s7
  loop: start=0, step=1, limit=6
  $region2: #{tpu_custom_call.1} parent=0 // loop_pre_header
    _
  $region3: #{tpu_custom_call.1} parent=0 // loop_header
    %s12 = sphi 0, %s16
    %p13 = scmp.ge.s32.totalorder %s12, 6
    %s22 = sphi 0, %s24
    %s25 = sphi 0, %s22
    %s26 = sphi 0, %s25
    %s42 = sphi 0, %s26
    %s46 = sphi 0, %s46
    %s48 = sphi 0, %s46
    %s49 = sphi 0, %s48
    %s63 = sphi 0, %s49
    %s67 = sphi 0, %s67
    %s69 = sphi 0, %s67
    %s70 = sphi 0, %s69
    %s84 = sphi 0, %s70
    %s88 = sphi 0, %s88
    %s90 = sphi 0, %s88
    %s91 = sphi 0, %s90
    %s105 = sphi 0, %s91
    %s109 = sphi 0, %s109
    %s111 = sphi 0, %s109
    %s112 = sphi 0, %s111
    %s126 = sphi 0, %s112
    %s130 = sphi 0, %s130
    %s132 = sphi 0, %s130
    %s133 = sphi 0, %s132
    %s147 = sphi 0, %s133
    %s153 = sphi 0, %s155
    %s156 = sphi 0, %s153
    %s157 = sphi 0, %s156
    %s173 = sphi 0, %s157
  $region4: #{tpu_custom_call.1} parent=0 // loop_header_branch
    %15 = sbr.rel (%p13) target = $region8
  $region5: #{tpu_custom_call.1} parent=0 // loop_body
    %s17 = ssub.s32 %s12, 1
    %s18 = ssub.s32 %s12, 2
    %s19 = sadd.s32 %s12, 1
    %s20 = ssub.s32 %s12, %s19
    %p21 = scmp.eq.s32.totalorder %s20, 0
    %s23 = sadd.s32 %s22, 1
    %s24 = scalar_select %p21, %s22, %s23
    %p27 = pneg %p21
    %p28 = scmp.eq.s32.totalorder %s12, 3
    %p29 = por %p27, %p28
    %p30 = scmp.ne.s32.totalorder %s22, %s25
    %p31 = scmp.eq.s32.totalorder %s12, 0
    %p32 = por %p30, %p31
    %p33 = scmp.ne.s32.totalorder %s22, %s25
    %p34 = scmp.eq.s32.totalorder %s17, 3
    %p35 = por %p33, %p34
    %p36 = scmp.ne.s32.totalorder %s25, %s26
    %p37 = scmp.eq.s32.totalorder %s17, 0
    %p38 = por %p36, %p37
    %p39 = scmp.ne.s32.totalorder %s25, %s26
    %p40 = scmp.eq.s32.totalorder %s18, 3
    %p41 = por %p39, %p40
    %p43 = scmp.ne.s32.totalorder %s26, %s42
    %p44 = scmp.eq.s32.totalorder %s18, 0
    %p45 = por %p43, %p44
    %s47 = sadd.s32 %s46, 1
    %p50 = scmp.eq.s32.totalorder %s12, 3
    %p51 = scmp.ne.s32.totalorder %s46, %s48
    %p52 = scmp.eq.s32.totalorder %s12, 0
    %p53 = por %p51, %p52
    %p54 = scmp.ne.s32.totalorder %s46, %s48
    %p55 = scmp.eq.s32.totalorder %s17, 3
    %p56 = por %p54, %p55
    %p57 = scmp.ne.s32.totalorder %s48, %s49
    %p58 = scmp.eq.s32.totalorder %s17, 0
    %p59 = por %p57, %p58
    %p60 = scmp.ne.s32.totalorder %s48, %s49
    %p61 = scmp.eq.s32.totalorder %s18, 3
    %p62 = por %p60, %p61
    %p64 = scmp.ne.s32.totalorder %s49, %s63
    %p65 = scmp.eq.s32.totalorder %s18, 0
    %p66 = por %p64, %p65
    %s68 = sadd.s32 %s67, 1
    %p71 = scmp.eq.s32.totalorder %s12, 3
    %p72 = scmp.ne.s32.totalorder %s67, %s69
    %p73 = scmp.eq.s32.totalorder %s12, 0
    %p74 = por %p72, %p73
    %p75 = scmp.ne.s32.totalorder %s67, %s69
    %p76 = scmp.eq.s32.totalorder %s17, 3
    %p77 = por %p75, %p76
    %p78 = scmp.ne.s32.totalorder %s69, %s70
    %p79 = scmp.eq.s32.totalorder %s17, 0
    %p80 = por %p78, %p79
    %p81 = scmp.ne.s32.totalorder %s69, %s70
    %p82 = scmp.eq.s32.totalorder %s18, 3
    %p83 = por %p81, %p82
    %p85 = scmp.ne.s32.totalorder %s70, %s84
    %p86 = scmp.eq.s32.totalorder %s18, 0
    %p87 = por %p85, %p86
    %s89 = sadd.s32 %s88, 1
    %p92 = scmp.eq.s32.totalorder %s12, 3
    %p93 = scmp.ne.s32.totalorder %s88, %s90
    %p94 = scmp.eq.s32.totalorder %s12, 0
    %p95 = por %p93, %p94
    %p96 = scmp.ne.s32.totalorder %s88, %s90
    %p97 = scmp.eq.s32.totalorder %s17, 3
    %p98 = por %p96, %p97
    %p99 = scmp.ne.s32.totalorder %s90, %s91
    %p100 = scmp.eq.s32.totalorder %s17, 0
    %p101 = por %p99, %p100
    %p102 = scmp.ne.s32.totalorder %s90, %s91
    %p103 = scmp.eq.s32.totalorder %s18, 3
    %p104 = por %p102, %p103
    %p106 = scmp.ne.s32.totalorder %s91, %s105
    %p107 = scmp.eq.s32.totalorder %s18, 0
    %p108 = por %p106, %p107
    %s110 = sadd.s32 %s109, 1
    %p113 = scmp.eq.s32.totalorder %s12, 3
    %p114 = scmp.ne.s32.totalorder %s109, %s111
    %p115 = scmp.eq.s32.totalorder %s12, 0
    %p116 = por %p114, %p115
    %p117 = scmp.ne.s32.totalorder %s109, %s111
    %p118 = scmp.eq.s32.totalorder %s17, 3
    %p119 = por %p117, %p118
    %p120 = scmp.ne.s32.totalorder %s111, %s112
    %p121 = scmp.eq.s32.totalorder %s17, 0
    %p122 = por %p120, %p121
    %p123 = scmp.ne.s32.totalorder %s111, %s112
    %p124 = scmp.eq.s32.totalorder %s18, 3
    %p125 = por %p123, %p124
    %p127 = scmp.ne.s32.totalorder %s112, %s126
    %p128 = scmp.eq.s32.totalorder %s18, 0
    %p129 = por %p127, %p128
    %s131 = sadd.s32 %s130, 1
    %p134 = scmp.eq.s32.totalorder %s12, 3
    %p135 = scmp.ne.s32.totalorder %s130, %s132
    %p136 = scmp.eq.s32.totalorder %s12, 0
    %p137 = por %p135, %p136
    %p138 = scmp.ne.s32.totalorder %s130, %s132
    %p139 = scmp.eq.s32.totalorder %s17, 3
    %p140 = por %p138, %p139
    %p141 = scmp.ne.s32.totalorder %s132, %s133
    %p142 = scmp.eq.s32.totalorder %s17, 0
    %p143 = por %p141, %p142
    %p144 = scmp.ne.s32.totalorder %s132, %s133
    %p145 = scmp.eq.s32.totalorder %s18, 3
    %p146 = por %p144, %p145
    %p148 = scmp.ne.s32.totalorder %s133, %s147
    %p149 = scmp.eq.s32.totalorder %s18, 0
    %p150 = por %p148, %p149
    %s151 = ssub.s32 %s12, %s19
    %p152 = scmp.eq.s32.totalorder %s151, 0
    %s154 = sadd.s32 %s153, 1
    %s155 = scalar_select %p152, %s153, %s154
    %p158 = pneg %p152
    %p159 = scmp.eq.s32.totalorder %s12, 3
    %p160 = por %p158, %p159
    %p161 = scmp.ne.s32.totalorder %s153, %s156
    %p162 = scmp.eq.s32.totalorder %s12, 0
    %p163 = por %p161, %p162
    %p164 = scmp.ne.s32.totalorder %s153, %s156
    %p165 = scmp.eq.s32.totalorder %s17, 3
    %p166 = por %p164, %p165
    %p167 = scmp.ne.s32.totalorder %s156, %s157
    %p168 = scmp.eq.s32.totalorder %s17, 0
    %p169 = por %p167, %p168
    %p170 = scmp.ne.s32.totalorder %s156, %s157
    %p171 = scmp.eq.s32.totalorder %s18, 3
    %p172 = por %p170, %p171
    %p174 = scmp.ne.s32.totalorder %s157, %s173
    %p175 = scmp.eq.s32.totalorder %s18, 0
    %p176 = por %p174, %p175
    %p177 = scmp.le.s32.totalorder 1, %s12
    %p178 = scmp.lt.s32.totalorder %s12, 5
    %p179 = pnand %p177, %p178
    %p180 = pneg %p179
    // Predicated region
    $region9: #{tpu_custom_call.1} parent=5 // pred_check
      _
    $region10: #{tpu_custom_call.1} parent=5 // pred_check_branch
      %182 = sbr.rel (%p179) target = $region12
    $region11: #{tpu_custom_call.1} parent=5 // pred_region
      %s183 = ssub.s32 %s12, 1
      // Predicated region
      $region13: #{tpu_custom_call.1} parent=11 // pred_check
        %p184 = pneg %p59
      $region14: #{tpu_custom_call.1} parent=11 // pred_check_branch
        %186 = sbr.rel (%p184) target = $region16
      $region15: #{tpu_custom_call.1} parent=11 // pred_region
        _
      $region16: #{tpu_custom_call.1} parent=11 // pred_fallthru
        _
      // Predicated region
      $region17: #{tpu_custom_call.1} parent=11 // pred_check
        %p187 = pneg %p80
      $region18: #{tpu_custom_call.1} parent=11 // pred_check_branch
        %189 = sbr.rel (%p187) target = $region20
      $region19: #{tpu_custom_call.1} parent=11 // pred_region
        _
      $region20: #{tpu_custom_call.1} parent=11 // pred_fallthru
        _
      // Predicated region
      $region21: #{tpu_custom_call.1} parent=11 // pred_check
        %p190 = pneg %p101
      $region22: #{tpu_custom_call.1} parent=11 // pred_check_branch
        %192 = sbr.rel (%p190) target = $region24
      $region23: #{tpu_custom_call.1} parent=11 // pred_region
        _
      $region24: #{tpu_custom_call.1} parent=11 // pred_fallthru
        _
      // Predicated region
      $region25: #{tpu_custom_call.1} parent=11 // pred_check
        %p193 = pneg %p122
      $region26: #{tpu_custom_call.1} parent=11 // pred_check_branch
        %195 = sbr.rel (%p193) target = $region28
      $region27: #{tpu_custom_call.1} parent=11 // pred_region
        _
      $region28: #{tpu_custom_call.1} parent=11 // pred_fallthru
        _
      // Predicated region
      $region29: #{tpu_custom_call.1} parent=11 // pred_check
        %p196 = pneg %p143
      $region30: #{tpu_custom_call.1} parent=11 // pred_check_branch
        %198 = sbr.rel (%p196) target = $region32
      $region31: #{tpu_custom_call.1} parent=11 // pred_region
        _
      $region32: #{tpu_custom_call.1} parent=11 // pred_fallthru
        _
    $region12: #{tpu_custom_call.1} parent=5 // pred_fallthru
      _
    %p199 = scmp.lt.s32.totalorder %s12, 4
    // Predicated region
    $region33: #{tpu_custom_call.1} parent=5 // pred_check
      %p200 = pneg %p199
    $region34: #{tpu_custom_call.1} parent=5 // pred_check_branch
      %202 = sbr.rel (%p200) target = $region36
    $region35: #{tpu_custom_call.1} parent=5 // pred_region
      // Predicated region
      $region37: #{tpu_custom_call.1} parent=35 // pred_check
        %p203 = pneg %p32
      $region38: #{tpu_custom_call.1} parent=35 // pred_check_branch
        %205 = sbr.rel (%p203) target = $region40
      $region39: #{tpu_custom_call.1} parent=35 // pred_region
        %p206 = scmp.lt.s32.totalorder %s12, 3
        %s207 = scalar_select %p206, %s12, 3
        %s208 = smul.addr %s207, 2
        %s209 = smul.addr %s208, 8
        %s210 = scalar_lea.vmem %s0, %s209
      $region40: #{tpu_custom_call.1} parent=35 // pred_fallthru
        _
    $region36: #{tpu_custom_call.1} parent=5 // pred_fallthru
      _
    %p211 = scmp.le.s32.totalorder 1, %s12
    %p212 = scmp.lt.s32.totalorder %s12, 5
    %p213 = pnand %p211, %p212
    %p214 = pneg %p213
    // Predicated region
    $region41: #{tpu_custom_call.1} parent=5 // pred_check
      _
    $region42: #{tpu_custom_call.1} parent=5 // pred_check_branch
      %216 = sbr.rel (%p213) target = $region44
    $region43: #{tpu_custom_call.1} parent=5 // pred_region
      %s217 = ssub.s32 %s12, 1
      %p218 = scmp.lt.s32.totalorder %s17, 3
      %s219 = scalar_select %p218, %s17, 3
      %s220 = smul.addr %s219, 2
      %s221 = smul.addr %s220, 8
      %s222 = scalar_lea.vmem %s0, %s221
      %p223 = pneg %p38
      %p224 = pneg %p35
      %p225 = pneg %p59
      %p226 = pneg %p56
      %p227 = pneg %p80
      %p228 = pneg %p77
      %p229 = pneg %p101
      %p230 = pneg %p98
      %p231 = pneg %p122
      %p232 = pneg %p119
      %p233 = pneg %p143
      %p234 = pneg %p140
      %p235 = pneg %p169
      %p236 = pneg %p166
      %p237 = scmp.lt.s32.totalorder %s17, 3
      %s238 = scalar_select %p237, %s17, 3
      %s239 = smul.addr %s238, 2
      %s240 = smul.addr %s239, 8
      %s241 = scalar_lea.vmem %s6, %s240
      %p242 = scmp.lt.s32.totalorder %s17, 3
      %s243 = scalar_select %p242, %s17, 3
      %s244 = smul.addr %s243, 2
      %s245 = smul.addr %s244, 8
      %s246 = scalar_lea.vmem %s0, %s245
      %p247 = scmp.lt.s32.totalorder %s17, 3
      %s248 = scalar_select %p247, %s17, 3
      %s249 = smul.addr %s248, 2
      %s250 = smul.addr %s249, 8
      %s251 = scalar_lea.vmem %s6, %s250
      %v252 = vld [vmem:[%s246] sm:$0xff]
      %v253 = vld [vmem:[%s246 + $0x8] sm:$0xff]
      %v254 = vld [vmem:[%s1] sm:$0xff]
      %v255 = vld [vmem:[%s1 + $0x8] sm:$0xff]
      %v256 = vld [vmem:[%s2] sm:$0xff]
      %v257 = vld [vmem:[%s2 + $0x8] sm:$0xff]
      %v258 = vld [vmem:[%s2 + $0x10] sm:$0xff]
      %v259 = vld [vmem:[%s2 + $0x18] sm:$0xff]
      %v260 = vld [vmem:[%s2 + $0x20] sm:$0xff]
      %v261 = vld [vmem:[%s2 + $0x28] sm:$0xff]
      %v262 = vld [vmem:[%s2 + $0x30] sm:$0xff]
      %v263 = vld [vmem:[%s2 + $0x38] sm:$0xff]
      %v264 = vld [vmem:[%s2 + $0x40] sm:$0xff]
      %v265 = vld [vmem:[%s2 + $0x48] sm:$0xff]
      %v266 = vld [vmem:[%s2 + $0x50] sm:$0xff]
      %v267 = vld [vmem:[%s2 + $0x58] sm:$0xff]
      %v268 = vld [vmem:[%s2 + $0x60] sm:$0xff]
      %v269 = vld [vmem:[%s2 + $0x68] sm:$0xff]
      %v270 = vld [vmem:[%s2 + $0x70] sm:$0xff]
      %v271 = vld [vmem:[%s2 + $0x78] sm:$0xff]
      %v272 = vld [vmem:[%s2 + $0x80] sm:$0xff]
      %v273 = vld [vmem:[%s2 + $0x88] sm:$0xff]
      %v274 = vld [vmem:[%s2 + $0x90] sm:$0xff]
      %v275 = vld [vmem:[%s2 + $0x98] sm:$0xff]
      %v276 = vld [vmem:[%s2 + $0xa0] sm:$0xff]
      %v277 = vld [vmem:[%s2 + $0xa8] sm:$0xff]
      %v278 = vld [vmem:[%s2 + $0xb0] sm:$0xff]
      %v279 = vld [vmem:[%s2 + $0xb8] sm:$0xff]
      %v280 = vld [vmem:[%s2 + $0xc0] sm:$0xff]
      %v281 = vld [vmem:[%s2 + $0xc8] sm:$0xff]
      %v282 = vld [vmem:[%s2 + $0xd0] sm:$0xff]
      %v283 = vld [vmem:[%s2 + $0xd8] sm:$0xff]
      %v284 = vld [vmem:[%s2 + $0xe0] sm:$0xff]
      %v285 = vld [vmem:[%s2 + $0xe8] sm:$0xff]
      %v286 = vld [vmem:[%s2 + $0xf0] sm:$0xff]
      %v287 = vld [vmem:[%s2 + $0xf8] sm:$0xff]
      %v288 = vld [vmem:[%s3] sm:$0xff]
      %v289 = vld [vmem:[%s3 + $0x8] sm:$0xff]
      %v290 = vld [vmem:[%s3 + $0x10] sm:$0xff]
      %v291 = vld [vmem:[%s3 + $0x18] sm:$0xff]
      %v292 = vld [vmem:[%s3 + $0x20] sm:$0xff]
      %v293 = vld [vmem:[%s3 + $0x28] sm:$0xff]
      %v294 = vld [vmem:[%s3 + $0x30] sm:$0xff]
      %v295 = vld [vmem:[%s3 + $0x38] sm:$0xff]
      %v296 = vld [vmem:[%s3 + $0x40] sm:$0xff]
      %v297 = vld [vmem:[%s3 + $0x48] sm:$0xff]
      %v298 = vld [vmem:[%s3 + $0x50] sm:$0xff]
      %v299 = vld [vmem:[%s3 + $0x58] sm:$0xff]
      %v300 = vld [vmem:[%s3 + $0x60] sm:$0xff]
      %v301 = vld [vmem:[%s3 + $0x68] sm:$0xff]
      %v302 = vld [vmem:[%s3 + $0x70] sm:$0xff]
      %v303 = vld [vmem:[%s3 + $0x78] sm:$0xff]
      %v304 = vld [vmem:[%s3 + $0x80] sm:$0xff]
      %v305 = vld [vmem:[%s3 + $0x88] sm:$0xff]
      %v306 = vld [vmem:[%s3 + $0x90] sm:$0xff]
      %v307 = vld [vmem:[%s3 + $0x98] sm:$0xff]
      %v308 = vld [vmem:[%s3 + $0xa0] sm:$0xff]
      %v309 = vld [vmem:[%s3 + $0xa8] sm:$0xff]
      %v310 = vld [vmem:[%s3 + $0xb0] sm:$0xff]
      %v311 = vld [vmem:[%s3 + $0xb8] sm:$0xff]
      %v312 = vld [vmem:[%s3 + $0xc0] sm:$0xff]
      %v313 = vld [vmem:[%s3 + $0xc8] sm:$0xff]
      %v314 = vld [vmem:[%s3 + $0xd0] sm:$0xff]
      %v315 = vld [vmem:[%s3 + $0xd8] sm:$0xff]
      %v316 = vld [vmem:[%s3 + $0xe0] sm:$0xff]
      %v317 = vld [vmem:[%s3 + $0xe8] sm:$0xff]
      %v318 = vld [vmem:[%s3 + $0xf0] sm:$0xff]
      %v319 = vld [vmem:[%s3 + $0xf8] sm:$0xff]
      %v320 = vld [vmem:[%s3 + $0x100] sm:$0xff]
      %v321 = vld [vmem:[%s3 + $0x108] sm:$0xff]
      %v322 = vld [vmem:[%s3 + $0x110] sm:$0xff]
      %v323 = vld [vmem:[%s3 + $0x118] sm:$0xff]
      %v324 = vld [vmem:[%s4] sm:$0x1]
      %v325 = vld [vmem:[%s4 + $0x1] sm:$0x1]
      %v326 = vld [vmem:[%s4 + $0x2] sm:$0x1]
      %v327 = vld [vmem:[%s4 + $0x3] sm:$0x1]
      %v328 = vld [vmem:[%s5] sm:$0xff]
      %v329 = vld [vmem:[%s5 + $0x8] sm:$0xff]
      %v330 = vld [vmem:[%s5 + $0x10] sm:$0xff]
      %v331 = vld [vmem:[%s5 + $0x18] sm:$0xff]
      %332 = vmatprep.subr.mxu0 0.0
      %333 = vmatpush1.msra.mxu0 %v256
      %334 = vmatprep.subr.mxu0 0.0
      %335 = vmatpush1.msra.mxu0 %v257
      %336 = vmatprep.subr.mxu0 0.0
      %337 = vmatpush1.msra.mxu0 %v258
      %338 = vmatprep.subr.mxu0 0.0
      %339 = vmatpush1.msra.mxu0 %v259
      %340 = vmatprep.subr.mxu0 0.0
      %341 = vmatpush1.msra.mxu0 %v260
      %342 = vmatprep.subr.mxu0 0.0
      %343 = vmatpush1.msra.mxu0 %v261
      %344 = vmatprep.subr.mxu0 0.0
      %345 = vmatpush1.msra.mxu0 %v262
      %346 = vmatprep.subr.mxu0 0.0
      %347 = vmatpush1.msra.mxu0 %v263
      %348 = vmatprep.subr.mxu0 0.0
      %349 = vmatpush1.msra.mxu0 %v264
      %350 = vmatprep.subr.mxu0 0.0
      %351 = vmatpush1.msra.mxu0 %v265
      %352 = vmatprep.subr.mxu0 0.0
      %353 = vmatpush1.msra.mxu0 %v266
      %354 = vmatprep.subr.mxu0 0.0
      %355 = vmatpush1.msra.mxu0 %v267
      %356 = vmatprep.subr.mxu0 0.0
      %357 = vmatpush1.msra.mxu0 %v268
      %358 = vmatprep.subr.mxu0 0.0
      %359 = vmatpush1.msra.mxu0 %v269
      %360 = vmatprep.subr.mxu0 0.0
      %361 = vmatpush1.msra.mxu0 %v270
      %362 = vmatprep.subr.mxu0 0.0
      %363 = vmatpush1.msra.mxu0 %v271
      %364 = vmatprep.subr.mxu0 0.0
      %365 = vmatpush1.msra.mxu0 0.0
      %366 = vmatprep.subr.mxu0 0.0
      %367 = vmatpush1.msra.mxu0 0.0
      %368 = vmatprep.subr.mxu0 0.0
      %369 = vmatpush1.msra.mxu0 0.0
      %370 = vmatprep.subr.mxu0 0.0
      %371 = vmatpush1.msra.mxu0 0.0
      %372 = vmatprep.subr.mxu0 0.0
      %373 = vmatpush1.msra.mxu0 0.0
      %374 = vmatprep.subr.mxu0 0.0
      %375 = vmatpush1.msra.mxu0 0.0
      %376 = vmatprep.subr.mxu0 0.0
      %377 = vmatpush1.msra.mxu0 0.0
      %378 = vmatprep.subr.mxu0 0.0
      %379 = vmatpush1.msra.mxu0 0.0
      %380 = vmatprep.subr.mxu0 0.0
      %381 = vmatpush1.msra.mxu0 0.0
      %382 = vmatprep.subr.mxu0 0.0
      %383 = vmatpush1.msra.mxu0 0.0
      %384 = vmatprep.subr.mxu0 0.0
      %385 = vmatpush1.msra.mxu0 0.0
      %386 = vmatprep.subr.mxu0 0.0
      %387 = vmatpush1.msra.mxu0 0.0
      %388 = vmatprep.subr.mxu0 0.0
      %389 = vmatpush1.msra.mxu0 0.0
      %390 = vmatprep.subr.mxu0 0.0
      %391 = vmatpush1.msra.mxu0 0.0
      %392 = vmatprep.subr.mxu0 0.0
      %393 = vmatpush1.msra.mxu0 0.0
      %394 = vmatprep.subr.mxu0 0.0
      %395 = vmatpush1.msra.mxu0 0.0
      %396 = vmatprep.mubr.f32.mxu0 0.0
      %397 = vmatmul.mubr.f32.gmra.mrb[0].mxu0 %v252
      %v398 = vpop.f32.mrb[0].mxu0
      %v399 = vadd.f32 0.0, %v398
      %v400 = vpop.f32.mrb[0].mxu0
      %401 = vmatprep.mubr.f32.mxu0 0.0
      %402 = vmatmul.mubr.f32.gmra.mrb[0].mxu0 %v253
      %v403 = vpop.f32.mrb[0].mxu0
      %v404 = vadd.f32 0.0, %v403
      %v405 = vpop.f32.mrb[0].mxu0
      %406 = vdwg.mxu0
      %v407 = vlaneseq
      %v408 = vshrl.u32 %v407, 7
      %v409 = vsub.s32 0, %v408
      %v410 = vrot.slane %v324, %v409
      %vm411 = vcmask 130048
      %v413 = vsel %vm411, %v254, 0
      %v416 = vsel %vm411, %v255, 0
      %418 = vmatprep.subr.mxu0 0.0
      %419 = vmatpush1.msra.mxu0 %v399
      %420 = vmatprep.subr.mxu0 0.0
      %421 = vmatpush1.msra.mxu0 %v404
      %422 = vmatprep.subr.mxu0 0.0
      %423 = vmatpush1.msra.mxu0 0.0
      %424 = vmatprep.subr.mxu0 0.0
      %425 = vmatpush1.msra.mxu0 0.0
      %426 = vmatprep.subr.mxu0 0.0
      %427 = vmatpush1.msra.mxu0 0.0
      %428 = vmatprep.subr.mxu0 0.0
      %429 = vmatpush1.msra.mxu0 0.0
      %430 = vmatprep.subr.mxu0 0.0
      %431 = vmatpush1.msra.mxu0 0.0
      %432 = vmatprep.subr.mxu0 0.0
      %433 = vmatpush1.msra.mxu0 0.0
      %434 = vmatprep.subr.mxu0 0.0
      %435 = vmatpush1.msra.mxu0 0.0
      %436 = vmatprep.subr.mxu0 0.0
      %437 = vmatpush1.msra.mxu0 0.0
      %438 = vmatprep.subr.mxu0 0.0
      %439 = vmatpush1.msra.mxu0 0.0
      %440 = vmatprep.subr.mxu0 0.0
      %441 = vmatpush1.msra.mxu0 0.0
      %442 = vmatprep.subr.mxu0 0.0
      %443 = vmatpush1.msra.mxu0 0.0
      %444 = vmatprep.subr.mxu0 0.0
      %445 = vmatpush1.msra.mxu0 0.0
      %446 = vmatprep.subr.mxu0 0.0
      %447 = vmatpush1.msra.mxu0 0.0
      %448 = vmatprep.subr.mxu0 0.0
      %449 = vmatpush1.msra.mxu0 0.0
      %450 = vmatprep.subr.mxu0 0.0
      %451 = vmatpush1.msra.mxu0 0.0
      %452 = vmatprep.subr.mxu0 0.0
      %453 = vmatpush1.msra.mxu0 0.0
      %454 = vmatprep.subr.mxu0 0.0
      %455 = vmatpush1.msra.mxu0 0.0
      %456 = vmatprep.subr.mxu0 0.0
      %457 = vmatpush1.msra.mxu0 0.0
      %458 = vmatprep.subr.mxu0 0.0
      %459 = vmatpush1.msra.mxu0 0.0
      %460 = vmatprep.subr.mxu0 0.0
      %461 = vmatpush1.msra.mxu0 0.0
      %462 = vmatprep.subr.mxu0 0.0
      %463 = vmatpush1.msra.mxu0 0.0
      %464 = vmatprep.subr.mxu0 0.0
      %465 = vmatpush1.msra.mxu0 0.0
      %466 = vmatprep.subr.mxu0 0.0
      %467 = vmatpush1.msra.mxu0 0.0
      %468 = vmatprep.subr.mxu0 0.0
      %469 = vmatpush1.msra.mxu0 0.0
      %470 = vmatprep.subr.mxu0 0.0
      %471 = vmatpush1.msra.mxu0 0.0
      %472 = vmatprep.subr.mxu0 0.0
      %473 = vmatpush1.msra.mxu0 0.0
      %474 = vmatprep.subr.mxu0 0.0
      %475 = vmatpush1.msra.mxu0 0.0
      %476 = vmatprep.subr.mxu0 0.0
      %477 = vmatpush1.msra.mxu0 0.0
      %478 = vmatprep.subr.mxu0 0.0
      %479 = vmatpush1.msra.mxu0 0.0
      %480 = vmatprep.subr.mxu0 0.0
      %481 = vmatpush1.msra.mxu0 0.0
      %482 = vmatprep.mubr.f32.mxu0 0.0
      %483 = vmatmul.mubr.f32.gmra.mrb[0].mxu0 %v413
      %v484 = vpop.f32.mrb[0].mxu0
      %v485 = vadd.f32 %v410, %v484
      %v486 = vpop.f32.mrb[0].mxu0
      %487 = vmatprep.mubr.f32.mxu0 0.0
      %488 = vmatmul.mubr.f32.gmra.mrb[0].mxu0 %v416
      %v489 = vpop.f32.mrb[0].mxu0
      %v490 = vadd.f32 %v410, %v489
      %v491 = vpop.f32.mrb[0].mxu0
      %492 = vdwg.mxu0
      %v493 = vmax.f32 %v485, 0.0
      %v494 = vmax.f32 %v490, 0.0
      %495 = vmatprep.subr.mxu0 0.0
      %496 = vmatpush1.msra.mxu0 %v272
      %497 = vmatprep.subr.mxu0 0.0
      %498 = vmatpush1.msra.mxu0 %v273
      %499 = vmatprep.subr.mxu0 0.0
      %500 = vmatpush1.msra.mxu0 %v274
      %501 = vmatprep.subr.mxu0 0.0
      %502 = vmatpush1.msra.mxu0 %v275
      %503 = vmatprep.subr.mxu0 0.0
      %504 = vmatpush1.msra.mxu0 %v276
      %505 = vmatprep.subr.mxu0 0.0
      %506 = vmatpush1.msra.mxu0 %v277
      %507 = vmatprep.subr.mxu0 0.0
      %508 = vmatpush1.msra.mxu0 %v278
      %509 = vmatprep.subr.mxu0 0.0
      %510 = vmatpush1.msra.mxu0 %v279
      %511 = vmatprep.subr.mxu0 0.0
      %512 = vmatpush1.msra.mxu0 %v280
      %513 = vmatprep.subr.mxu0 0.0
      %514 = vmatpush1.msra.mxu0 %v281
      %515 = vmatprep.subr.mxu0 0.0
      %516 = vmatpush1.msra.mxu0 %v282
      %517 = vmatprep.subr.mxu0 0.0
      %518 = vmatpush1.msra.mxu0 %v283
      %519 = vmatprep.subr.mxu0 0.0
      %520 = vmatpush1.msra.mxu0 %v284
      %521 = vmatprep.subr.mxu0 0.0
      %522 = vmatpush1.msra.mxu0 %v285
      %523 = vmatprep.subr.mxu0 0.0
      %524 = vmatpush1.msra.mxu0 %v286
      %525 = vmatprep.subr.mxu0 0.0
      %526 = vmatpush1.msra.mxu0 %v287
      %527 = vmatprep.subr.mxu0 0.0
      %528 = vmatpush1.msra.mxu0 0.0
      %529 = vmatprep.subr.mxu0 0.0
      %530 = vmatpush1.msra.mxu0 0.0
      %531 = vmatprep.subr.mxu0 0.0
      %532 = vmatpush1.msra.mxu0 0.0
      %533 = vmatprep.subr.mxu0 0.0
      %534 = vmatpush1.msra.mxu0 0.0
      %535 = vmatprep.subr.mxu0 0.0
      %536 = vmatpush1.msra.mxu0 0.0
      %537 = vmatprep.subr.mxu0 0.0
      %538 = vmatpush1.msra.mxu0 0.0
      %539 = vmatprep.subr.mxu0 0.0
      %540 = vmatpush1.msra.mxu0 0.0
      %541 = vmatprep.subr.mxu0 0.0
      %542 = vmatpush1.msra.mxu0 0.0
      %543 = vmatprep.subr.mxu0 0.0
      %544 = vmatpush1.msra.mxu0 0.0
      %545 = vmatprep.subr.mxu0 0.0
      %546 = vmatpush1.msra.mxu0 0.0
      %547 = vmatprep.subr.mxu0 0.0
      %548 = vmatpush1.msra.mxu0 0.0
      %549 = vmatprep.subr.mxu0 0.0
      %550 = vmatpush1.msra.mxu0 0.0
      %551 = vmatprep.subr.mxu0 0.0
      %552 = vmatpush1.msra.mxu0 0.0
      %553 = vmatprep.subr.mxu0 0.0
      %554 = vmatpush1.msra.mxu0 0.0
      %555 = vmatprep.subr.mxu0 0.0
      %556 = vmatpush1.msra.mxu0 0.0
      %557 = vmatprep.subr.mxu0 0.0
      %558 = vmatpush1.msra.mxu0 0.0
      %559 = vmatprep.mubr.f32.mxu0 0.0
      %560 = vmatmul.mubr.f32.gmra.mrb[0].mxu0 %v493
      %v561 = vpop.f32.mrb[0].mxu0
      %v562 = vadd.f32 0.0, %v561
      %v563 = vpop.f32.mrb[0].mxu0
      %564 = vmatprep.mubr.f32.mxu0 0.0
      %565 = vmatmul.mubr.f32.gmra.mrb[0].mxu0 %v494
      %v566 = vpop.f32.mrb[0].mxu0
      %v567 = vadd.f32 0.0, %v566
      %v568 = vpop.f32.mrb[0].mxu0
      %569 = vdwg.mxu0
      %v570 = vlaneseq
      %v571 = vshrl.u32 %v570, 7
      %v572 = vsub.s32 0, %v571
      %v573 = vrot.slane %v325, %v572
      %574 = vmatprep.subr.mxu0 0.0
      %575 = vmatpush1.msra.mxu0 %v562
      %576 = vmatprep.subr.mxu0 0.0
      %577 = vmatpush1.msra.mxu0 %v567
      %578 = vmatprep.subr.mxu0 0.0
      %579 = vmatpush1.msra.mxu0 0.0
      %580 = vmatprep.subr.mxu0 0.0
      %581 = vmatpush1.msra.mxu0 0.0
      %582 = vmatprep.subr.mxu0 0.0
      %583 = vmatpush1.msra.mxu0 0.0
      %584 = vmatprep.subr.mxu0 0.0
      %585 = vmatpush1.msra.mxu0 0.0
      %586 = vmatprep.subr.mxu0 0.0
      %587 = vmatpush1.msra.mxu0 0.0
      %588 = vmatprep.subr.mxu0 0.0
      %589 = vmatpush1.msra.mxu0 0.0
      %590 = vmatprep.subr.mxu0 0.0
      %591 = vmatpush1.msra.mxu0 0.0
      %592 = vmatprep.subr.mxu0 0.0
      %593 = vmatpush1.msra.mxu0 0.0
      %594 = vmatprep.subr.mxu0 0.0
      %595 = vmatpush1.msra.mxu0 0.0
      %596 = vmatprep.subr.mxu0 0.0
      %597 = vmatpush1.msra.mxu0 0.0
      %598 = vmatprep.subr.mxu0 0.0
      %599 = vmatpush1.msra.mxu0 0.0
      %600 = vmatprep.subr.mxu0 0.0
      %601 = vmatpush1.msra.mxu0 0.0
      %602 = vmatprep.subr.mxu0 0.0
      %603 = vmatpush1.msra.mxu0 0.0
      %604 = vmatprep.subr.mxu0 0.0
      %605 = vmatpush1.msra.mxu0 0.0
      %606 = vmatprep.subr.mxu0 0.0
      %607 = vmatpush1.msra.mxu0 0.0
      %608 = vmatprep.subr.mxu0 0.0
      %609 = vmatpush1.msra.mxu0 0.0
      %610 = vmatprep.subr.mxu0 0.0
      %611 = vmatpush1.msra.mxu0 0.0
      %612 = vmatprep.subr.mxu0 0.0
      %613 = vmatpush1.msra.mxu0 0.0
      %614 = vmatprep.subr.mxu0 0.0
      %615 = vmatpush1.msra.mxu0 0.0
      %616 = vmatprep.subr.mxu0 0.0
      %617 = vmatpush1.msra.mxu0 0.0
      %618 = vmatprep.subr.mxu0 0.0
      %619 = vmatpush1.msra.mxu0 0.0
      %620 = vmatprep.subr.mxu0 0.0
      %621 = vmatpush1.msra.mxu0 0.0
      %622 = vmatprep.subr.mxu0 0.0
      %623 = vmatpush1.msra.mxu0 0.0
      %624 = vmatprep.subr.mxu0 0.0
      %625 = vmatpush1.msra.mxu0 0.0
      %626 = vmatprep.subr.mxu0 0.0
      %627 = vmatpush1.msra.mxu0 0.0
      %628 = vmatprep.subr.mxu0 0.0
      %629 = vmatpush1.msra.mxu0 0.0
      %630 = vmatprep.subr.mxu0 0.0
      %631 = vmatpush1.msra.mxu0 0.0
      %632 = vmatprep.subr.mxu0 0.0
      %633 = vmatpush1.msra.mxu0 0.0
      %634 = vmatprep.subr.mxu0 0.0
      %635 = vmatpush1.msra.mxu0 0.0
      %636 = vmatprep.subr.mxu0 0.0
      %637 = vmatpush1.msra.mxu0 0.0
      %638 = vmatprep.mubr.f32.mxu0 0.0
      %639 = vmatmul.mubr.f32.gmra.mrb[0].mxu0 %v413
      %v640 = vpop.f32.mrb[0].mxu0
      %v641 = vadd.f32 %v573, %v640
      %v642 = vpop.f32.mrb[0].mxu0
      %643 = vmatprep.mubr.f32.mxu0 0.0
      %644 = vmatmul.mubr.f32.gmra.mrb[0].mxu0 %v416
      %v645 = vpop.f32.mrb[0].mxu0
      %v646 = vadd.f32 %v573, %v645
      %v647 = vpop.f32.mrb[0].mxu0
      %648 = vdwg.mxu0
      %v649 = vmax.f32 %v641, 0.0
      %v650 = vmax.f32 %v646, 0.0
      %v652 = vsel %vm411, 1.0, 0
      %654 = vmatprep.subr.mxu0 0.0
      %655 = vmatpush1.msra.mxu0 %v493
      %656 = vmatprep.subr.mxu0 0.0
      %657 = vmatpush1.msra.mxu0 %v494
      %658 = vmatprep.subr.mxu0 0.0
      %659 = vmatpush1.msra.mxu0 0.0
      %660 = vmatprep.subr.mxu0 0.0
      %661 = vmatpush1.msra.mxu0 0.0
      %662 = vmatprep.subr.mxu0 0.0
      %663 = vmatpush1.msra.mxu0 0.0
      %664 = vmatprep.subr.mxu0 0.0
      %665 = vmatpush1.msra.mxu0 0.0
      %666 = vmatprep.subr.mxu0 0.0
      %667 = vmatpush1.msra.mxu0 0.0
      %668 = vmatprep.subr.mxu0 0.0
      %669 = vmatpush1.msra.mxu0 0.0
      %670 = vmatprep.subr.mxu0 0.0
      %671 = vmatpush1.msra.mxu0 0.0
      %672 = vmatprep.subr.mxu0 0.0
      %673 = vmatpush1.msra.mxu0 0.0
      %674 = vmatprep.subr.mxu0 0.0
      %675 = vmatpush1.msra.mxu0 0.0
      %676 = vmatprep.subr.mxu0 0.0
      %677 = vmatpush1.msra.mxu0 0.0
      %678 = vmatprep.subr.mxu0 0.0
      %679 = vmatpush1.msra.mxu0 0.0
      %680 = vmatprep.subr.mxu0 0.0
      %681 = vmatpush1.msra.mxu0 0.0
      %682 = vmatprep.subr.mxu0 0.0
      %683 = vmatpush1.msra.mxu0 0.0
      %684 = vmatprep.subr.mxu0 0.0
      %685 = vmatpush1.msra.mxu0 0.0
      %686 = vmatprep.subr.mxu0 0.0
      %687 = vmatpush1.msra.mxu0 0.0
      %688 = vmatprep.subr.mxu0 0.0
      %689 = vmatpush1.msra.mxu0 0.0
      %690 = vmatprep.subr.mxu0 0.0
      %691 = vmatpush1.msra.mxu0 0.0
      %692 = vmatprep.subr.mxu0 0.0
      %693 = vmatpush1.msra.mxu0 0.0
      %694 = vmatprep.subr.mxu0 0.0
      %695 = vmatpush1.msra.mxu0 0.0
      %696 = vmatprep.subr.mxu0 0.0
      %697 = vmatpush1.msra.mxu0 0.0
      %698 = vmatprep.subr.mxu0 0.0
      %699 = vmatpush1.msra.mxu0 0.0
      %700 = vmatprep.subr.mxu0 0.0
      %701 = vmatpush1.msra.mxu0 0.0
      %702 = vmatprep.subr.mxu0 0.0
      %703 = vmatpush1.msra.mxu0 0.0
      %704 = vmatprep.subr.mxu0 0.0
      %705 = vmatpush1.msra.mxu0 0.0
      %706 = vmatprep.subr.mxu0 0.0
      %707 = vmatpush1.msra.mxu0 0.0
      %708 = vmatprep.subr.mxu0 0.0
      %709 = vmatpush1.msra.mxu0 0.0
      %710 = vmatprep.subr.mxu0 0.0
      %711 = vmatpush1.msra.mxu0 0.0
      %712 = vmatprep.subr.mxu0 0.0
      %713 = vmatpush1.msra.mxu0 0.0
      %714 = vmatprep.subr.mxu0 0.0
      %715 = vmatpush1.msra.mxu0 0.0
      %716 = vmatprep.subr.mxu0 0.0
      %717 = vmatpush1.msra.mxu0 0.0
      %718 = vmatprep.mubr.f32.mxu0 0.0
      %719 = vmatmul.mubr.f32.gmra.mrb[0].mxu0 %v652
      %v720 = vpop.f32.mrb[0].mxu0
      %v721 = vadd.f32 0.0, %v720
      %v722 = vpop.f32.mrb[0].mxu0
      %723 = vdwg.mxu0
      %v724 = vmul.f32 %v721, 0.0625
      %725 = vmatprep.subr.mxu0 0.0
      %726 = vmatpush1.msra.mxu0 %v649
      %727 = vmatprep.subr.mxu0 0.0
      %728 = vmatpush1.msra.mxu0 %v650
      %729 = vmatprep.subr.mxu0 0.0
      %730 = vmatpush1.msra.mxu0 0.0
      %731 = vmatprep.subr.mxu0 0.0
      %732 = vmatpush1.msra.mxu0 0.0
      %733 = vmatprep.subr.mxu0 0.0
      %734 = vmatpush1.msra.mxu0 0.0
      %735 = vmatprep.subr.mxu0 0.0
      %736 = vmatpush1.msra.mxu0 0.0
      %737 = vmatprep.subr.mxu0 0.0
      %738 = vmatpush1.msra.mxu0 0.0
      %739 = vmatprep.subr.mxu0 0.0
      %740 = vmatpush1.msra.mxu0 0.0
      %741 = vmatprep.subr.mxu0 0.0
      %742 = vmatpush1.msra.mxu0 0.0
      %743 = vmatprep.subr.mxu0 0.0
      %744 = vmatpush1.msra.mxu0 0.0
      %745 = vmatprep.subr.mxu0 0.0
      %746 = vmatpush1.msra.mxu0 0.0
      %747 = vmatprep.subr.mxu0 0.0
      %748 = vmatpush1.msra.mxu0 0.0
      %749 = vmatprep.subr.mxu0 0.0
      %750 = vmatpush1.msra.mxu0 0.0
      %751 = vmatprep.subr.mxu0 0.0
      %752 = vmatpush1.msra.mxu0 0.0
      %753 = vmatprep.subr.mxu0 0.0
      %754 = vmatpush1.msra.mxu0 0.0
      %755 = vmatprep.subr.mxu0 0.0
      %756 = vmatpush1.msra.mxu0 0.0
      %757 = vmatprep.subr.mxu0 0.0
      %758 = vmatpush1.msra.mxu0 0.0
      %759 = vmatprep.subr.mxu0 0.0
      %760 = vmatpush1.msra.mxu0 0.0
      %761 = vmatprep.subr.mxu0 0.0
      %762 = vmatpush1.msra.mxu0 0.0
      %763 = vmatprep.subr.mxu0 0.0
      %764 = vmatpush1.msra.mxu0 0.0
      %765 = vmatprep.subr.mxu0 0.0
      %766 = vmatpush1.msra.mxu0 0.0
      %767 = vmatprep.subr.mxu0 0.0
      %768 = vmatpush1.msra.mxu0 0.0
      %769 = vmatprep.subr.mxu0 0.0
      %770 = vmatpush1.msra.mxu0 0.0
      %771 = vmatprep.subr.mxu0 0.0
      %772 = vmatpush1.msra.mxu0 0.0
      %773 = vmatprep.subr.mxu0 0.0
      %774 = vmatpush1.msra.mxu0 0.0
      %775 = vmatprep.subr.mxu0 0.0
      %776 = vmatpush1.msra.mxu0 0.0
      %777 = vmatprep.subr.mxu0 0.0
      %778 = vmatpush1.msra.mxu0 0.0
      %779 = vmatprep.subr.mxu0 0.0
      %780 = vmatpush1.msra.mxu0 0.0
      %781 = vmatprep.subr.mxu0 0.0
      %782 = vmatpush1.msra.mxu0 0.0
      %783 = vmatprep.subr.mxu0 0.0
      %784 = vmatpush1.msra.mxu0 0.0
      %785 = vmatprep.subr.mxu0 0.0
      %786 = vmatpush1.msra.mxu0 0.0
      %787 = vmatprep.subr.mxu0 0.0
      %788 = vmatpush1.msra.mxu0 0.0
      %789 = vmatprep.mubr.f32.mxu0 0.0
      %790 = vmatmul.mubr.f32.gmra.mrb[0].mxu0 %v652
      %v791 = vpop.f32.mrb[0].mxu0
      %v792 = vadd.f32 0.0, %v791
      %v793 = vpop.f32.mrb[0].mxu0
      %794 = vdwg.mxu0
      %v795 = vmul.f32 %v792, 0.0625
      %v796 = vlaneseq
      %v797 = vshrl.u32 %v796, 7
      %v798 = vsub.s32 0, %v797
      %v799 = vrot.slane %v724, %v798
      %v800 = vlaneseq
      %v801 = vshrl.u32 %v800, 7
      %v802 = vsub.s32 0, %v801
      %v803 = vrot.slane %v795, %v802
      %v804 = vmul.f32 %v799, %v328
      %v805 = vmul.f32 %v803, %v329
      %v806 = vmul.f32 %v799, %v330
      %v807 = vmul.f32 %v803, %v331
      %v808 = vlaneseq
      %v809 = vshrl.u32 %v808, 7
      %v810 = vsub.s32 0, %v809
      %v811 = vrot.slane %v326, %v810
      %812 = vmatprep.subr.mxu0 0.0
      %813 = vmatpush1.msra.mxu0 %v288
      %814 = vmatprep.subr.mxu0 0.0
      %815 = vmatpush1.msra.mxu0 %v289
      %816 = vmatprep.subr.mxu0 0.0
      %817 = vmatpush1.msra.mxu0 %v290
      %818 = vmatprep.subr.mxu0 0.0
      %819 = vmatpush1.msra.mxu0 %v291
      %820 = vmatprep.subr.mxu0 0.0
      %821 = vmatpush1.msra.mxu0 %v292
      %822 = vmatprep.subr.mxu0 0.0
      %823 = vmatpush1.msra.mxu0 %v293
      %824 = vmatprep.subr.mxu0 0.0
      %825 = vmatpush1.msra.mxu0 %v294
      %826 = vmatprep.subr.mxu0 0.0
      %827 = vmatpush1.msra.mxu0 %v295
      %828 = vmatprep.subr.mxu0 0.0
      %829 = vmatpush1.msra.mxu0 %v296
      %830 = vmatprep.subr.mxu0 0.0
      %831 = vmatpush1.msra.mxu0 %v297
      %832 = vmatprep.subr.mxu0 0.0
      %833 = vmatpush1.msra.mxu0 %v298
      %834 = vmatprep.subr.mxu0 0.0
      %835 = vmatpush1.msra.mxu0 %v299
      %836 = vmatprep.subr.mxu0 0.0
      %837 = vmatpush1.msra.mxu0 %v300
      %838 = vmatprep.subr.mxu0 0.0
      %839 = vmatpush1.msra.mxu0 %v301
      %840 = vmatprep.subr.mxu0 0.0
      %841 = vmatpush1.msra.mxu0 %v302
      %842 = vmatprep.subr.mxu0 0.0
      %843 = vmatpush1.msra.mxu0 %v303
      %844 = vmatprep.subr.mxu0 0.0
      %845 = vmatpush1.msra.mxu0 %v304
      %846 = vmatprep.subr.mxu0 0.0
      %847 = vmatpush1.msra.mxu0 %v305
      %848 = vmatprep.subr.mxu0 0.0
      %849 = vmatpush1.msra.mxu0 %v306
      %850 = vmatprep.subr.mxu0 0.0
      %851 = vmatpush1.msra.mxu0 %v307
      %852 = vmatprep.subr.mxu0 0.0
      %853 = vmatpush1.msra.mxu0 %v308
      %854 = vmatprep.subr.mxu0 0.0
      %855 = vmatpush1.msra.mxu0 %v309
      %856 = vmatprep.subr.mxu0 0.0
      %857 = vmatpush1.msra.mxu0 %v310
      %858 = vmatprep.subr.mxu0 0.0
      %859 = vmatpush1.msra.mxu0 %v311
      %860 = vmatprep.subr.mxu0 0.0
      %861 = vmatpush1.msra.mxu0 %v312
      %862 = vmatprep.subr.mxu0 0.0
      %863 = vmatpush1.msra.mxu0 %v313
      %864 = vmatprep.subr.mxu0 0.0
      %865 = vmatpush1.msra.mxu0 %v314
      %866 = vmatprep.subr.mxu0 0.0
      %867 = vmatpush1.msra.mxu0 %v315
      %868 = vmatprep.subr.mxu0 0.0
      %869 = vmatpush1.msra.mxu0 %v316
      %870 = vmatprep.subr.mxu0 0.0
      %871 = vmatpush1.msra.mxu0 %v317
      %872 = vmatprep.subr.mxu0 0.0
      %873 = vmatpush1.msra.mxu0 %v318
      %874 = vmatprep.subr.mxu0 0.0
      %875 = vmatpush1.msra.mxu0 %v319
      %876 = vmatprep.mubr.f32.mxu0 %v805
      %877 = vmatmul.mubr.f32.gmra.mrb[0].mxu0 %v804
      %v878 = vpop.f32.mrb[0].mxu0
      %v879 = vadd.f32 %v811, %v878
      %v880 = vpop.f32.mrb[0].mxu0
      %881 = vmatprep.mubr.f32.mxu0 %v807
      %882 = vmatmul.mubr.f32.gmra.mrb[0].mxu0 %v806
      %v883 = vpop.f32.mrb[0].mxu0
      %v884 = vadd.f32 %v811, %v883
      %v885 = vpop.f32.mrb[0].mxu0
      %886 = vdwg.mxu0
      %v887 = vmax.f32 %v879, 0.0
      %v888 = vmax.f32 %v884, 0.0
      %v889 = vlaneseq
      %v890 = vshrl.u32 %v889, 7
      %v891 = vsub.s32 0, %v890
      %v892 = vrot.slane %v327, %v891
      %vm893 = vcmask 261120
      %v895 = vsel %vm893, %v887, 0
      %v898 = vsel %vm893, %v888, 0
      %900 = vmatprep.subr.mxu0 0.0
      %901 = vmatpush1.msra.mxu0 %v320
      %902 = vmatprep.subr.mxu0 0.0
      %903 = vmatpush1.msra.mxu0 %v321
      %904 = vmatprep.subr.mxu0 0.0
      %905 = vmatpush1.msra.mxu0 %v322
      %906 = vmatprep.subr.mxu0 0.0
      %907 = vmatpush1.msra.mxu0 %v323
      %908 = vmatprep.subr.mxu0 0.0
      %909 = vmatpush1.msra.mxu0 0.0
      %910 = vmatprep.subr.mxu0 0.0
      %911 = vmatpush1.msra.mxu0 0.0
      %912 = vmatprep.subr.mxu0 0.0
      %913 = vmatpush1.msra.mxu0 0.0
      %914 = vmatprep.subr.mxu0 0.0
      %915 = vmatpush1.msra.mxu0 0.0
      %916 = vmatprep.subr.mxu0 0.0
      %917 = vmatpush1.msra.mxu0 0.0
      %918 = vmatprep.subr.mxu0 0.0
      %919 = vmatpush1.msra.mxu0 0.0
      %920 = vmatprep.subr.mxu0 0.0
      %921 = vmatpush1.msra.mxu0 0.0
      %922 = vmatprep.subr.mxu0 0.0
      %923 = vmatpush1.msra.mxu0 0.0
      %924 = vmatprep.subr.mxu0 0.0
      %925 = vmatpush1.msra.mxu0 0.0
      %926 = vmatprep.subr.mxu0 0.0
      %927 = vmatpush1.msra.mxu0 0.0
      %928 = vmatprep.subr.mxu0 0.0
      %929 = vmatpush1.msra.mxu0 0.0
      %930 = vmatprep.subr.mxu0 0.0
      %931 = vmatpush1.msra.mxu0 0.0
      %932 = vmatprep.subr.mxu0 0.0
      %933 = vmatpush1.msra.mxu0 0.0
      %934 = vmatprep.subr.mxu0 0.0
      %935 = vmatpush1.msra.mxu0 0.0
      %936 = vmatprep.subr.mxu0 0.0
      %937 = vmatpush1.msra.mxu0 0.0
      %938 = vmatprep.subr.mxu0 0.0
      %939 = vmatpush1.msra.mxu0 0.0
      %940 = vmatprep.subr.mxu0 0.0
      %941 = vmatpush1.msra.mxu0 0.0
      %942 = vmatprep.subr.mxu0 0.0
      %943 = vmatpush1.msra.mxu0 0.0
      %944 = vmatprep.subr.mxu0 0.0
      %945 = vmatpush1.msra.mxu0 0.0
      %946 = vmatprep.subr.mxu0 0.0
      %947 = vmatpush1.msra.mxu0 0.0
      %948 = vmatprep.subr.mxu0 0.0
      %949 = vmatpush1.msra.mxu0 0.0
      %950 = vmatprep.subr.mxu0 0.0
      %951 = vmatpush1.msra.mxu0 0.0
      %952 = vmatprep.subr.mxu0 0.0
      %953 = vmatpush1.msra.mxu0 0.0
      %954 = vmatprep.subr.mxu0 0.0
      %955 = vmatpush1.msra.mxu0 0.0
      %956 = vmatprep.subr.mxu0 0.0
      %957 = vmatpush1.msra.mxu0 0.0
      %958 = vmatprep.subr.mxu0 0.0
      %959 = vmatpush1.msra.mxu0 0.0
      %960 = vmatprep.subr.mxu0 0.0
      %961 = vmatpush1.msra.mxu0 0.0
      %962 = vmatprep.subr.mxu0 0.0
      %963 = vmatpush1.msra.mxu0 0.0
      %964 = vmatprep.mubr.f32.mxu0 0.0
      %965 = vmatmul.mubr.f32.gmra.mrb[0].mxu0 %v895
      %v966 = vpop.f32.mrb[0].mxu0
      %v967 = vadd.f32 %v892, %v966
      %v968 = vpop.f32.mrb[0].mxu0
      %969 = vmatprep.mubr.f32.mxu0 0.0
      %970 = vmatmul.mubr.f32.gmra.mrb[0].mxu0 %v898
      %v971 = vpop.f32.mrb[0].mxu0
      %v972 = vadd.f32 %v892, %v971
      %v973 = vpop.f32.mrb[0].mxu0
      %974 = vdwg.mxu0
      %vm975 = vcmask 23552
      %v976 = vsel %vm975, %v967, -inf
      %977 = vmax.xlane.f32.xlu0 %v976
      %v978 = vpop.xlane.xlu0 %977
      %v979 = vsel %vm975, %v972, -inf
      %980 = vmax.xlane.f32.xlu0 %v979
      %v981 = vpop.xlane.xlu0 %980
      %v982 = vsub.f32 %v967, %v978
      %v983 = vsub.f32 %v972, %v981
      %v984 = vmul.f32 %v982, 1.442695
      %v985 = vpow.pop %v984
      %v986 = vmul.f32 %v983, 1.442695
      %v987 = vpow.pop %v986
      %v988 = vsel %vm975, %v985, 0.0
      %989 = vadd.xlane.f32.xlu0 %v988
      %v990 = vpop.xlane.xlu0 %989
      %v991 = vsel %vm975, %v987, 0.0
      %992 = vadd.xlane.f32.xlu0 %v991
      %v993 = vpop.xlane.xlu0 %992
      %v994 = vlog2.pop %v990
      %v995 = vmul.f32 %v994, 0.6931472
      %v996 = vlog2.pop %v993
      %v997 = vmul.f32 %v996, 0.6931472
      %v998 = vadd.f32 %v995, %v978
      %v999 = vadd.f32 %v997, %v981
      %v1000 = vsub.f32 %v967, %v998
      %v1001 = vsub.f32 %v972, %v999
      %1002 = vst.msk [vmem:[%s251] sm:$0xff] %vm975, %v1000
      %1003 = vst.msk [vmem:[%s251 + $0x8] sm:$0xff] %vm975, %v1001
      %p1004 = scmp.lt.s32.totalorder %s17, 3
      %s1005 = scalar_select %p1004, %s17, 3
      %s1006 = smul.addr %s1005, 2
      %s1007 = smul.addr %s1006, 8
      %s1008 = scalar_lea.vmem %s6, %s1007
      // Predicated region
      $region45: #{tpu_custom_call.1} parent=43 // pred_check
        %p1009 = pneg %p166
      $region46: #{tpu_custom_call.1} parent=43 // pred_check_branch
        %1011 = sbr.rel (%p1009) target = $region48
      $region47: #{tpu_custom_call.1} parent=43 // pred_region
        _
      $region48: #{tpu_custom_call.1} parent=43 // pred_fallthru
        _
    $region44: #{tpu_custom_call.1} parent=5 // pred_fallthru
      _
    %p1012 = scmp.le.s32.totalorder 2, %s12
    // Predicated region
    $region49: #{tpu_custom_call.1} parent=5 // pred_check
      %p1013 = pneg %p1012
    $region50: #{tpu_custom_call.1} parent=5 // pred_check_branch
      %1015 = sbr.rel (%p1013) target = $region52
    $region51: #{tpu_custom_call.1} parent=5 // pred_region
      %s1016 = ssub.s32 %s12, 2
      // Predicated region
      $region53: #{tpu_custom_call.1} parent=51 // pred_check
        %p1017 = pneg %p172
      $region54: #{tpu_custom_call.1} parent=51 // pred_check_branch
        %1019 = sbr.rel (%p1017) target = $region56
      $region55: #{tpu_custom_call.1} parent=51 // pred_region
        %p1020 = scmp.lt.s32.totalorder %s18, 3
        %s1021 = scalar_select %p1020, %s18, 3
        %s1022 = smul.addr %s1021, 2
        %s1023 = smul.addr %s1022, 8
        %s1024 = scalar_lea.vmem %s6, %s1023
      $region56: #{tpu_custom_call.1} parent=51 // pred_fallthru
        _
    $region52: #{tpu_custom_call.1} parent=5 // pred_fallthru
      _
  $region6: #{tpu_custom_call.1} parent=0 // loop_footer
    %s16 = sadd.s32 1, %s12
  $region7: #{tpu_custom_call.1} parent=0 // loop_footer_branch
    %11 = sbr.rel target = $region3
  $region8: #{tpu_custom_call.1} parent=0 // loop_exit
    _

</llo_original>
